<compile_context>
chip_gen: v7x
topology: tpu7x:2x2x1
jax: 0.10.0
libtpu: 0.0.40
codegen_flags: <defaults>
</compile_context>

<pallas_src>
import jax
import jax.numpy as jnp
from jax.experimental import pallas as pl
from jax.experimental.pallas import tpu as pltpu

BN_EPS = 1e-5
LANE = 128


def _round_up(a, m):
    return (a + m - 1) // m * m


def conv2d_block(x, w, b, gamma, beta, *, stride=1, padding=0,
                 r_tile=512, r_tile2=2048, out_dtype=None, channels_last=False):
    """Conv2d -> BatchNorm2d (training-mode batch stats) -> SiLU.

    x: (N, Cin, H, W) NCHW,  w: (Cout, Cin, kh, kw) OIHW (PyTorch layouts).

    Per-step pass-1 VMEM (bytes) is roughly
      2*(2*r_tile*Cin*2 + kh*kw*Cin*Cp*2 + r_tile*Cp*2 + 4*r_tile)
        + 2*r_tile*Cin*2 + r_tile*Cp*4
    Size r_tile from this against ~48 MiB on v7x (64 MiB physical) or
    64-100 MiB on v5e/v6e (128 MiB physical) instead of shrinking it blindly.
    """
    N, Cin, H, W = x.shape
    Cout, Cin_w, kh, kw = w.shape
    assert Cin == Cin_w
    if out_dtype is None:
        out_dtype = x.dtype

    Hp, Wp = H + 2 * padding, W + 2 * padding
    Ho = (Hp - kh) // stride + 1
    Wo = (Wp - kw) // stride + 1
    R = N * Ho * Wo                      # number of valid output positions
    Cp = _round_up(Cout, LANE)           # lane-dense output channels

    # Halo of the kh*kw taps in flattened-row units must fit inside one
    # neighbor tile.
    halo = (kh - 1) * Wp + (kw - 1)
    r_tile = max(_round_up(r_tile, 128), _round_up(halo, 128))
    r_tile2 = _round_up(max(r_tile2, r_tile), r_tile)

    Rfull = N * Hp * Wp                  # augmented row space (all padded pos.)
    Rpad = _round_up(Rfull, r_tile2)     # multiple of both tiles
    ntiles1 = Rpad // r_tile
    ntiles2 = Rpad // r_tile2
    Rx = Rpad + r_tile                   # +1 zero neighbor tile for the halo

    # ---- input slab: NHWC, zero-padded, bf16, flattened to rows ------------
    # (cast to bf16 first so all wrapper-side copies move bf16, not f32)
    x_rows = jnp.transpose(x, (0, 2, 3, 1)).astype(jnp.bfloat16)      # NHWC
    x_rows = jnp.pad(x_rows, ((0, 0), (padding, padding),
                              (padding, padding), (0, 0)))
    x_rows = x_rows.reshape(Rfull, Cin)
    x_rows = jnp.pad(x_rows, ((0, Rx - Rfull), (0, 0)))

    # ---- per-tap weights: (kh*kw, Cin, Cp) bf16 -----------------------------
    w3 = jnp.transpose(w, (2, 3, 1, 0)).reshape(kh * kw, Cin, Cout)
    w3 = jnp.pad(w3, ((0, 0), (0, 0), (0, Cp - Cout))).astype(jnp.bfloat16)

    # Conv bias is mathematically cancelled by the BatchNorm mean subtraction,
    # so it is dropped from the kernel entirely (exact, pure perf win).
    del b

    # ---- valid-row mask (excludes padded/garbage/strided-over positions) ---
    ar = jnp.arange(Hp)
    ac = jnp.arange(Wp)
    va = (ar % stride == 0) & (ar < Ho * stride)
    vb = (ac % stride == 0) & (ac < Wo * stride)
    mask = (va[:, None] & vb[None, :]).astype(jnp.float32)            # (Hp,Wp)
    mask = jnp.broadcast_to(mask[None], (N, Hp, Wp)).reshape(Rfull, 1)
    mask = jnp.pad(mask, ((0, Rpad - Rfull), (0, 0)))

    taps = kh * kw
    tap_off = tuple(i * Wp + j for i in range(kh) for j in range(kw))  # static

    cparams = pltpu.CompilerParams(
        dimension_semantics=("parallel",),
        vmem_limit_bytes=48 * 1024 * 1024,
    )

    # ---------------- pass 1: per-tap conv + masked BN partials -------------
    def conv_stats_kernel(xa_ref, xb_ref, w_ref, m_ref, y_ref, stats_ref,
                          xbuf, acc_ref):
        # xa/xb: (r_tile, Cin) bf16 current + next row block (halo source)
        # w_ref: (taps, Cin, Cp) bf16, resident
        # m_ref: (r_tile, 1) f32 valid-row mask
        # y_ref: (r_tile, Cp) bf16 conv output
        # stats_ref: (1, 2, Cp) f32 per-tile [sum, sum_sq] over valid rows
        xbuf[0:r_tile, :] = xa_ref[...]
        xbuf[r_tile:, :] = xb_ref[...]
        acc_ref[...] = jnp.dot(xbuf[tap_off[0]:tap_off[0] + r_tile, :],
                               w_ref[0], preferred_element_type=jnp.float32)
        for t in range(1, taps):          # static unroll; offsets are static
            o = tap_off[t]
            acc_ref[...] += jnp.dot(xbuf[o:o + r_tile, :], w_ref[t],
                                    preferred_element_type=jnp.float32)
        acc = acc_ref[...]
        y_ref[...] = acc.astype(y_ref.dtype)          # bf16 writeback
        m = m_ref[...]
        stats_ref[...] = jnp.stack(
            [jnp.sum(acc * m, axis=0, keepdims=True),
             jnp.sum(acc * acc * m, axis=0, keepdims=True)], axis=1)

    y, stats = pl.pallas_call(
        conv_stats_kernel,
        out_shape=(
            jax.ShapeDtypeStruct((Rpad, Cp), jnp.bfloat16),
            jax.ShapeDtypeStruct((ntiles1, 2, Cp), jnp.float32),
        ),
        grid_spec=pltpu.PrefetchScalarGridSpec(
            num_scalar_prefetch=0,
            grid=(ntiles1,),
            in_specs=[
                pl.BlockSpec((r_tile, Cin), lambda i: (i, 0)),       # rows i
                pl.BlockSpec((r_tile, Cin), lambda i: (i + 1, 0)),   # rows i+1
                pl.BlockSpec((taps, Cin, Cp), lambda i: (0, 0, 0)),  # weights
                pl.BlockSpec((r_tile, 1), lambda i: (i, 0)),         # mask
            ],
            out_specs=(
                pl.BlockSpec((r_tile, Cp), lambda i: (i, 0)),        # y
                pl.BlockSpec((1, 2, Cp), lambda i: (i, 0, 0)),       # partials
            ),
            scratch_shapes=[
                pltpu.VMEM((2 * r_tile, Cin), jnp.bfloat16),         # row halo
                pltpu.VMEM((r_tile, Cp), jnp.float32),               # f32 acc
            ],
        ),
        compiler_params=cparams,
    )(x_rows, x_rows, w3, mask)

    # ---- combine partial stats & fold BN into one scale/shift FMA ----------
    gamma_p = jnp.pad(gamma.astype(jnp.float32), (0, Cp - Cout))
    beta_p = jnp.pad(beta.astype(jnp.float32), (0, Cp - Cout))
    tot = jnp.sum(stats, axis=0)                          # (2, Cp)
    mean = tot[0] / R
    var = jnp.maximum(tot[1] / R - mean * mean, 0.0)
    inv = jax.lax.rsqrt(var + BN_EPS)
    scale = (gamma_p * inv).reshape(1, Cp)
    shift = (beta_p - mean * gamma_p * inv).reshape(1, Cp)

    # ---------------- pass 2: fused BN (scale/shift) + SiLU -----------------
    def bn_silu_kernel(y_ref, scale_ref, shift_ref, o_ref):
        xn = y_ref[...].astype(jnp.float32) * scale_ref[...] + shift_ref[...]
        o_ref[...] = (xn * jax.nn.sigmoid(xn)).astype(o_ref.dtype)

    io_alias = ({0: 0}
                if jax.dtypes.canonicalize_dtype(out_dtype) == y.dtype else {})
    out2 = pl.pallas_call(
        bn_silu_kernel,
        out_shape=jax.ShapeDtypeStruct((Rpad, Cp), out_dtype),
        grid_spec=pltpu.PrefetchScalarGridSpec(
            num_scalar_prefetch=0,
            grid=(ntiles2,),
            in_specs=[
                pl.BlockSpec((r_tile2, Cp), lambda i: (i, 0)),
                pl.BlockSpec((1, Cp), lambda i: (0, 0)),
                pl.BlockSpec((1, Cp), lambda i: (0, 0)),
            ],
            out_specs=pl.BlockSpec((r_tile2, Cp), lambda i: (i, 0)),
        ),
        compiler_params=cparams,
        input_output_aliases=io_alias,
    )(y, scale, shift)

    # ---- gather valid positions (drop augmented-space garbage rows) --------
    out_aug = out2[:Rfull].reshape(N, Hp, Wp, Cp)
    out_nhwc = out_aug[:, 0:Ho * stride:stride, 0:Wo * stride:stride, :Cout]
    if channels_last:
        return out_nhwc          # channels-last consumers skip the transpose
    return jnp.transpose(out_nhwc, (0, 3, 1, 2))


def _reference(x, w, b, gamma, beta, *, stride, padding):
    # True module semantics (Conv2d + bias -> BatchNorm2d batch stats -> SiLU);
    # conv inputs cast to bf16 (f32 accumulation) to match the kernel's MXU
    # precision.  The kernel additionally stores the conv intermediate in bf16,
    # which the test tolerance (1e-2) covers.
    y = jax.lax.conv_general_dilated(
        x.astype(jnp.bfloat16), w.astype(jnp.bfloat16),
        window_strides=(stride, stride),
        padding=[(padding, padding), (padding, padding)],
        dimension_numbers=("NCHW", "OIHW", "NCHW"),
        preferred_element_type=jnp.float32)
    y = y + b[None, :, None, None]
    mean = jnp.mean(y, axis=(0, 2, 3), keepdims=True)
    var = jnp.mean((y - mean) ** 2, axis=(0, 2, 3), keepdims=True)
    yn = (y - mean) * jax.lax.rsqrt(var + BN_EPS)
    yn = yn * gamma[None, :, None, None] + beta[None, :, None, None]
    return yn * jax.nn.sigmoid(yn)


if __name__ == "__main__":
    key = jax.random.PRNGKey(0)
    k_x, k_w, k_b = jax.random.split(key, 3)

    N, Cin, H, W = 2, 4, 16, 16
    Cout, ksz, stride, padding = 8, 3, 1, 1

    x = jax.random.normal(k_x, (N, Cin, H, W), dtype=jnp.float32)
    # deterministic synthetic parameters (Conv2d weight/bias, BN gamma/beta)
    w = jax.random.normal(k_w, (Cout, Cin, ksz, ksz), dtype=jnp.float32) * 0.1
    b = jax.random.normal(k_b, (Cout,), dtype=jnp.float32) * 0.01
    gamma = jnp.ones((Cout,), dtype=jnp.float32)   # BatchNorm2d default init
    beta = jnp.zeros((Cout,), dtype=jnp.float32)

    # Small tiles so the toy shape exercises multi-step grids in both passes
    # (N*Hp*Wp = 648 rows -> 6 pass-1 tiles, 3 pass-2 tiles); use the defaults
    # (512 / 2048) for production shapes.
    out = conv2d_block(x, w, b, gamma, beta, stride=stride, padding=padding,
                       r_tile=128, r_tile2=256)
    out = jax.block_until_ready(out)

    assert out.shape == (N, Cout, H, W), out.shape
    ref = _reference(x, w, b, gamma, beta, stride=stride, padding=padding)
    err = float(jnp.max(jnp.abs(out - ref)))
    # 1e-2 covers the bf16 conv intermediate stored between the two passes
    # (BN statistics themselves are taken from the f32 MXU accumulator).
    assert jnp.allclose(out, ref, atol=1e-2, rtol=1e-2), err

    print("KERNEL_OK")
</pallas_src>

<mosaic_0001>
module attributes {stable_mosaic.version = 11 : i64} {
  func.func @conv_stats_kernel(%arg0: i32, %arg1: memref<128x4xbf16, #tpu.memory_space<vmem>>, %arg2: memref<128x4xbf16, #tpu.memory_space<vmem>>, %arg3: memref<9x4x128xbf16, #tpu.memory_space<vmem>>, %arg4: memref<128x1xf32, #tpu.memory_space<vmem>>, %arg5: memref<128x128xbf16, #tpu.memory_space<vmem>>, %arg6: memref<1x2x128xf32, #tpu.memory_space<vmem>>, %arg7: memref<256x4xbf16, #tpu.memory_space<vmem>>, %arg8: memref<128x128xf32, #tpu.memory_space<vmem>>) attributes {dimension_semantics = [#tpu.dimension_semantics<parallel>], iteration_bounds = array<i64: 6>, scalar_prefetch = 0 : i64, scratch_operands = 2 : i64, tpu.core_type = #tpu.core_type<tc>, window_params = [{transform_indices = @transform_0, window_bounds = array<i64: 128, 4>}, {transform_indices = @transform_1, window_bounds = array<i64: 128, 4>}, {pipeline_mode = #tpu.pipeline_mode<synchronous>, transform_indices = @transform_2, window_bounds = array<i64: 9, 4, 128>}, {transform_indices = @transform_3, window_bounds = array<i64: 128, 1>}, {transform_indices = @transform_4, window_bounds = array<i64: 128, 128>}, {transform_indices = @transform_5, window_bounds = array<i64: 1, 2, 128>}]} {
    %c0 = arith.constant 0 : index
    %c0_0 = arith.constant 0 : index
    %0 = vector.load %arg1[%c0, %c0_0] : memref<128x4xbf16, #tpu.memory_space<vmem>>, vector<128x4xbf16>
    %c0_1 = arith.constant 0 : index
    %c0_2 = arith.constant 0 : index
    %1 = vector.load %arg7[%c0_1, %c0_2] : memref<256x4xbf16, #tpu.memory_space<vmem>>, vector<128x4xbf16>
    tpu.vector_store %arg7[%c0_1, %c0_2], %0 {strides = array<i32>} : memref<256x4xbf16, #tpu.memory_space<vmem>>, vector<128x4xbf16>,
    %c0_3 = arith.constant 0 : index
    %c0_4 = arith.constant 0 : index
    %2 = vector.load %arg2[%c0_3, %c0_4] : memref<128x4xbf16, #tpu.memory_space<vmem>>, vector<128x4xbf16>
    %c128 = arith.constant 128 : index
    %c0_5 = arith.constant 0 : index
    %3 = vector.load %arg7[%c128, %c0_5] : memref<256x4xbf16, #tpu.memory_space<vmem>>, vector<128x4xbf16>
    tpu.vector_store %arg7[%c128, %c0_5], %2 {strides = array<i32>} : memref<256x4xbf16, #tpu.memory_space<vmem>>, vector<128x4xbf16>,
    %c0_6 = arith.constant 0 : index
    %c0_7 = arith.constant 0 : index
    %4 = vector.load %arg7[%c0_6, %c0_7] : memref<256x4xbf16, #tpu.memory_space<vmem>>, vector<128x4xbf16>
    %c0_8 = arith.constant 0 : index
    %c0_9 = arith.constant 0 : index
    %c0_10 = arith.constant 0 : index
    %5 = vector.load %arg3[%c0_8, %c0_9, %c0_10] : memref<9x4x128xbf16, #tpu.memory_space<vmem>>, vector<1x4x128xbf16>
    %6 = vector.shape_cast %5 : vector<1x4x128xbf16> to vector<4x128xbf16>
    %cst = arith.constant dense<0.000000e+00> : vector<128x128xf32>
    %7 = tpu.matmul %4, %6, %cst {dimension_numbers = #tpu.dot_dimension_numbers<[1], [0], [0], [1], [0, 0, 1, 1], [], []>} : vector<128x4xbf16>, vector<4x128xbf16>, vector<128x128xf32> -> vector<128x128xf32>
    %c0_11 = arith.constant 0 : index
    %c0_12 = arith.constant 0 : index
    %8 = vector.load %arg8[%c0_11, %c0_12] : memref<128x128xf32, #tpu.memory_space<vmem>>, vector<128x128xf32>
    tpu.vector_store %arg8[%c0_11, %c0_12], %7 {strides = array<i32>} : memref<128x128xf32, #tpu.memory_space<vmem>>, vector<128x128xf32>,
    %c0_13 = arith.constant 0 : index
    %c0_14 = arith.constant 0 : index
    %9 = vector.load %arg8[%c0_13, %c0_14] : memref<128x128xf32, #tpu.memory_space<vmem>>, vector<128x128xf32>
    %c1 = arith.constant 1 : index
    %c0_15 = arith.constant 0 : index
    %10 = vector.load %arg7[%c1, %c0_15] : memref<256x4xbf16, #tpu.memory_space<vmem>>, vector<128x4xbf16>
    %c1_16 = arith.constant 1 : index
    %c0_17 = arith.constant 0 : index
    %c0_18 = arith.constant 0 : index
    %11 = vector.load %arg3[%c1_16, %c0_17, %c0_18] : memref<9x4x128xbf16, #tpu.memory_space<vmem>>, vector<1x4x128xbf16>
    %12 = vector.shape_cast %11 : vector<1x4x128xbf16> to vector<4x128xbf16>
    %cst_19 = arith.constant dense<0.000000e+00> : vector<128x128xf32>
    %13 = tpu.matmul %10, %12, %cst_19 {dimension_numbers = #tpu.dot_dimension_numbers<[1], [0], [0], [1], [0, 0, 1, 1], [], []>} : vector<128x4xbf16>, vector<4x128xbf16>, vector<128x128xf32> -> vector<128x128xf32>
    %14 = arith.addf %9, %13 : vector<128x128xf32>
    %c0_20 = arith.constant 0 : index
    %c0_21 = arith.constant 0 : index
    %15 = vector.load %arg8[%c0_20, %c0_21] : memref<128x128xf32, #tpu.memory_space<vmem>>, vector<128x128xf32>
    tpu.vector_store %arg8[%c0_20, %c0_21], %14 {strides = array<i32>} : memref<128x128xf32, #tpu.memory_space<vmem>>, vector<128x128xf32>,
    %c0_22 = arith.constant 0 : index
    %c0_23 = arith.constant 0 : index
    %16 = vector.load %arg8[%c0_22, %c0_23] : memref<128x128xf32, #tpu.memory_space<vmem>>, vector<128x128xf32>
    %c2 = arith.constant 2 : index
    %c0_24 = arith.constant 0 : index
    %17 = vector.load %arg7[%c2, %c0_24] : memref<256x4xbf16, #tpu.memory_space<vmem>>, vector<128x4xbf16>
    %c2_25 = arith.constant 2 : index
    %c0_26 = arith.constant 0 : index
    %c0_27 = arith.constant 0 : index
    %18 = vector.load %arg3[%c2_25, %c0_26, %c0_27] : memref<9x4x128xbf16, #tpu.memory_space<vmem>>, vector<1x4x128xbf16>
    %19 = vector.shape_cast %18 : vector<1x4x128xbf16> to vector<4x128xbf16>
    %cst_28 = arith.constant dense<0.000000e+00> : vector<128x128xf32>
    %20 = tpu.matmul %17, %19, %cst_28 {dimension_numbers = #tpu.dot_dimension_numbers<[1], [0], [0], [1], [0, 0, 1, 1], [], []>} : vector<128x4xbf16>, vector<4x128xbf16>, vector<128x128xf32> -> vector<128x128xf32>
    %21 = arith.addf %16, %20 : vector<128x128xf32>
    %c0_29 = arith.constant 0 : index
    %c0_30 = arith.constant 0 : index
    %22 = vector.load %arg8[%c0_29, %c0_30] : memref<128x128xf32, #tpu.memory_space<vmem>>, vector<128x128xf32>
    tpu.vector_store %arg8[%c0_29, %c0_30], %21 {strides = array<i32>} : memref<128x128xf32, #tpu.memory_space<vmem>>, vector<128x128xf32>,
    %c0_31 = arith.constant 0 : index
    %c0_32 = arith.constant 0 : index
    %23 = vector.load %arg8[%c0_31, %c0_32] : memref<128x128xf32, #tpu.memory_space<vmem>>, vector<128x128xf32>
    %c18 = arith.constant 18 : index
    %c0_33 = arith.constant 0 : index
    %24 = vector.load %arg7[%c18, %c0_33] : memref<256x4xbf16, #tpu.memory_space<vmem>>, vector<128x4xbf16>
    %c3 = arith.constant 3 : index
    %c0_34 = arith.constant 0 : index
    %c0_35 = arith.constant 0 : index
    %25 = vector.load %arg3[%c3, %c0_34, %c0_35] : memref<9x4x128xbf16, #tpu.memory_space<vmem>>, vector<1x4x128xbf16>
    %26 = vector.shape_cast %25 : vector<1x4x128xbf16> to vector<4x128xbf16>
    %cst_36 = arith.constant dense<0.000000e+00> : vector<128x128xf32>
    %27 = tpu.matmul %24, %26, %cst_36 {dimension_numbers = #tpu.dot_dimension_numbers<[1], [0], [0], [1], [0, 0, 1, 1], [], []>} : vector<128x4xbf16>, vector<4x128xbf16>, vector<128x128xf32> -> vector<128x128xf32>
    %28 = arith.addf %23, %27 : vector<128x128xf32>
    %c0_37 = arith.constant 0 : index
    %c0_38 = arith.constant 0 : index
    %29 = vector.load %arg8[%c0_37, %c0_38] : memref<128x128xf32, #tpu.memory_space<vmem>>, vector<128x128xf32>
    tpu.vector_store %arg8[%c0_37, %c0_38], %28 {strides = array<i32>} : memref<128x128xf32, #tpu.memory_space<vmem>>, vector<128x128xf32>,
    %c0_39 = arith.constant 0 : index
    %c0_40 = arith.constant 0 : index
    %30 = vector.load %arg8[%c0_39, %c0_40] : memref<128x128xf32, #tpu.memory_space<vmem>>, vector<128x128xf32>
    %c19 = arith.constant 19 : index
    %c0_41 = arith.constant 0 : index
    %31 = vector.load %arg7[%c19, %c0_41] : memref<256x4xbf16, #tpu.memory_space<vmem>>, vector<128x4xbf16>
    %c4 = arith.constant 4 : index
    %c0_42 = arith.constant 0 : index
    %c0_43 = arith.constant 0 : index
    %32 = vector.load %arg3[%c4, %c0_42, %c0_43] : memref<9x4x128xbf16, #tpu.memory_space<vmem>>, vector<1x4x128xbf16>
    %33 = vector.shape_cast %32 : vector<1x4x128xbf16> to vector<4x128xbf16>
    %cst_44 = arith.constant dense<0.000000e+00> : vector<128x128xf32>
    %34 = tpu.matmul %31, %33, %cst_44 {dimension_numbers = #tpu.dot_dimension_numbers<[1], [0], [0], [1], [0, 0, 1, 1], [], []>} : vector<128x4xbf16>, vector<4x128xbf16>, vector<128x128xf32> -> vector<128x128xf32>
    %35 = arith.addf %30, %34 : vector<128x128xf32>
    %c0_45 = arith.constant 0 : index
    %c0_46 = arith.constant 0 : index
    %36 = vector.load %arg8[%c0_45, %c0_46] : memref<128x128xf32, #tpu.memory_space<vmem>>, vector<128x128xf32>
    tpu.vector_store %arg8[%c0_45, %c0_46], %35 {strides = array<i32>} : memref<128x128xf32, #tpu.memory_space<vmem>>, vector<128x128xf32>,
    %c0_47 = arith.constant 0 : index
    %c0_48 = arith.constant 0 : index
    %37 = vector.load %arg8[%c0_47, %c0_48] : memref<128x128xf32, #tpu.memory_space<vmem>>, vector<128x128xf32>
    %c20 = arith.constant 20 : index
    %c0_49 = arith.constant 0 : index
    %38 = vector.load %arg7[%c20, %c0_49] : memref<256x4xbf16, #tpu.memory_space<vmem>>, vector<128x4xbf16>
    %c5 = arith.constant 5 : index
    %c0_50 = arith.constant 0 : index
    %c0_51 = arith.constant 0 : index
    %39 = vector.load %arg3[%c5, %c0_50, %c0_51] : memref<9x4x128xbf16, #tpu.memory_space<vmem>>, vector<1x4x128xbf16>
    %40 = vector.shape_cast %39 : vector<1x4x128xbf16> to vector<4x128xbf16>
    %cst_52 = arith.constant dense<0.000000e+00> : vector<128x128xf32>
    %41 = tpu.matmul %38, %40, %cst_52 {dimension_numbers = #tpu.dot_dimension_numbers<[1], [0], [0], [1], [0, 0, 1, 1], [], []>} : vector<128x4xbf16>, vector<4x128xbf16>, vector<128x128xf32> -> vector<128x128xf32>
    %42 = arith.addf %37, %41 : vector<128x128xf32>
    %c0_53 = arith.constant 0 : index
    %c0_54 = arith.constant 0 : index
    %43 = vector.load %arg8[%c0_53, %c0_54] : memref<128x128xf32, #tpu.memory_space<vmem>>, vector<128x128xf32>
    tpu.vector_store %arg8[%c0_53, %c0_54], %42 {strides = array<i32>} : memref<128x128xf32, #tpu.memory_space<vmem>>, vector<128x128xf32>,
    %c0_55 = arith.constant 0 : index
    %c0_56 = arith.constant 0 : index
    %44 = vector.load %arg8[%c0_55, %c0_56] : memref<128x128xf32, #tpu.memory_space<vmem>>, vector<128x128xf32>
    %c36 = arith.constant 36 : index
    %c0_57 = arith.constant 0 : index
    %45 = vector.load %arg7[%c36, %c0_57] : memref<256x4xbf16, #tpu.memory_space<vmem>>, vector<128x4xbf16>
    %c6 = arith.constant 6 : index
    %c0_58 = arith.constant 0 : index
    %c0_59 = arith.constant 0 : index
    %46 = vector.load %arg3[%c6, %c0_58, %c0_59] : memref<9x4x128xbf16, #tpu.memory_space<vmem>>, vector<1x4x128xbf16>
    %47 = vector.shape_cast %46 : vector<1x4x128xbf16> to vector<4x128xbf16>
    %cst_60 = arith.constant dense<0.000000e+00> : vector<128x128xf32>
    %48 = tpu.matmul %45, %47, %cst_60 {dimension_numbers = #tpu.dot_dimension_numbers<[1], [0], [0], [1], [0, 0, 1, 1], [], []>} : vector<128x4xbf16>, vector<4x128xbf16>, vector<128x128xf32> -> vector<128x128xf32>
    %49 = arith.addf %44, %48 : vector<128x128xf32>
    %c0_61 = arith.constant 0 : index
    %c0_62 = arith.constant 0 : index
    %50 = vector.load %arg8[%c0_61, %c0_62] : memref<128x128xf32, #tpu.memory_space<vmem>>, vector<128x128xf32>
    tpu.vector_store %arg8[%c0_61, %c0_62], %49 {strides = array<i32>} : memref<128x128xf32, #tpu.memory_space<vmem>>, vector<128x128xf32>,
    %c0_63 = arith.constant 0 : index
    %c0_64 = arith.constant 0 : index
    %51 = vector.load %arg8[%c0_63, %c0_64] : memref<128x128xf32, #tpu.memory_space<vmem>>, vector<128x128xf32>
    %c37 = arith.constant 37 : index
    %c0_65 = arith.constant 0 : index
    %52 = vector.load %arg7[%c37, %c0_65] : memref<256x4xbf16, #tpu.memory_space<vmem>>, vector<128x4xbf16>
    %c7 = arith.constant 7 : index
    %c0_66 = arith.constant 0 : index
    %c0_67 = arith.constant 0 : index
    %53 = vector.load %arg3[%c7, %c0_66, %c0_67] : memref<9x4x128xbf16, #tpu.memory_space<vmem>>, vector<1x4x128xbf16>
    %54 = vector.shape_cast %53 : vector<1x4x128xbf16> to vector<4x128xbf16>
    %cst_68 = arith.constant dense<0.000000e+00> : vector<128x128xf32>
    %55 = tpu.matmul %52, %54, %cst_68 {dimension_numbers = #tpu.dot_dimension_numbers<[1], [0], [0], [1], [0, 0, 1, 1], [], []>} : vector<128x4xbf16>, vector<4x128xbf16>, vector<128x128xf32> -> vector<128x128xf32>
    %56 = arith.addf %51, %55 : vector<128x128xf32>
    %c0_69 = arith.constant 0 : index
    %c0_70 = arith.constant 0 : index
    %57 = vector.load %arg8[%c0_69, %c0_70] : memref<128x128xf32, #tpu.memory_space<vmem>>, vector<128x128xf32>
    tpu.vector_store %arg8[%c0_69, %c0_70], %56 {strides = array<i32>} : memref<128x128xf32, #tpu.memory_space<vmem>>, vector<128x128xf32>,
    %c0_71 = arith.constant 0 : index
    %c0_72 = arith.constant 0 : index
    %58 = vector.load %arg8[%c0_71, %c0_72] : memref<128x128xf32, #tpu.memory_space<vmem>>, vector<128x128xf32>
    %c38 = arith.constant 38 : index
    %c0_73 = arith.constant 0 : index
    %59 = vector.load %arg7[%c38, %c0_73] : memref<256x4xbf16, #tpu.memory_space<vmem>>, vector<128x4xbf16>
    %c8 = arith.constant 8 : index
    %c0_74 = arith.constant 0 : index
    %c0_75 = arith.constant 0 : index
    %60 = vector.load %arg3[%c8, %c0_74, %c0_75] : memref<9x4x128xbf16, #tpu.memory_space<vmem>>, vector<1x4x128xbf16>
    %61 = vector.shape_cast %60 : vector<1x4x128xbf16> to vector<4x128xbf16>
    %cst_76 = arith.constant dense<0.000000e+00> : vector<128x128xf32>
    %62 = tpu.matmul %59, %61, %cst_76 {dimension_numbers = #tpu.dot_dimension_numbers<[1], [0], [0], [1], [0, 0, 1, 1], [], []>} : vector<128x4xbf16>, vector<4x128xbf16>, vector<128x128xf32> -> vector<128x128xf32>
    %63 = arith.addf %58, %62 : vector<128x128xf32>
    %c0_77 = arith.constant 0 : index
    %c0_78 = arith.constant 0 : index
    %64 = vector.load %arg8[%c0_77, %c0_78] : memref<128x128xf32, #tpu.memory_space<vmem>>, vector<128x128xf32>
    tpu.vector_store %arg8[%c0_77, %c0_78], %63 {strides = array<i32>} : memref<128x128xf32, #tpu.memory_space<vmem>>, vector<128x128xf32>,
    %c0_79 = arith.constant 0 : index
    %c0_80 = arith.constant 0 : index
    %65 = vector.load %arg8[%c0_79, %c0_80] : memref<128x128xf32, #tpu.memory_space<vmem>>, vector<128x128xf32>
    %66 = arith.truncf %65 : vector<128x128xf32> to vector<128x128xbf16>
    %c0_81 = arith.constant 0 : index
    %c0_82 = arith.constant 0 : index
    %67 = vector.load %arg5[%c0_81, %c0_82] : memref<128x128xbf16, #tpu.memory_space<vmem>>, vector<128x128xbf16>
    tpu.vector_store %arg5[%c0_81, %c0_82], %66 {strides = array<i32>} : memref<128x128xbf16, #tpu.memory_space<vmem>>, vector<128x128xbf16>,
    %c0_83 = arith.constant 0 : index
    %c0_84 = arith.constant 0 : index
    %68 = vector.load %arg4[%c0_83, %c0_84] : memref<128x1xf32, #tpu.memory_space<vmem>>, vector<128x1xf32>
    %69 = vector.broadcast %68 : vector<128x1xf32> to vector<128x128xf32>
    %70 = arith.mulf %65, %69 : vector<128x128xf32>
    %cst_85 = arith.constant dense<0.000000e+00> : vector<128xf32>
    %71 = vector.multi_reduction <add>, %70, %cst_85 [0] : vector<128x128xf32> to vector<128xf32>
    %72 = vector.shape_cast %71 : vector<128xf32> to vector<1x128xf32>
    %73 = arith.mulf %65, %65 : vector<128x128xf32>
    %74 = vector.broadcast %68 : vector<128x1xf32> to vector<128x128xf32>
    %75 = arith.mulf %73, %74 : vector<128x128xf32>
    %cst_86 = arith.constant dense<0.000000e+00> : vector<128xf32>
    %76 = vector.multi_reduction <add>, %75, %cst_86 [0] : vector<128x128xf32> to vector<128xf32>
    %77 = vector.shape_cast %76 : vector<128xf32> to vector<1x128xf32>
    %78 = vector.shape_cast %72 : vector<1x128xf32> to vector<1x1x128xf32>
    %79 = vector.shape_cast %77 : vector<1x128xf32> to vector<1x1x128xf32>
    %80 = tpu.concatenate %78, %79 in 1 : vector<1x1x128xf32>, vector<1x1x128xf32> -> vector<1x2x128xf32>
    %c0_87 = arith.constant 0 : index
    %c0_88 = arith.constant 0 : index
    %c0_89 = arith.constant 0 : index
    %81 = vector.load %arg6[%c0_87, %c0_88, %c0_89] : memref<1x2x128xf32, #tpu.memory_space<vmem>>, vector<1x2x128xf32>
    tpu.vector_store %arg6[%c0_87, %c0_88, %c0_89], %80 {strides = array<i32>} : memref<1x2x128xf32, #tpu.memory_space<vmem>>, vector<1x2x128xf32>,
    return
  }
  func.func @transform_0(%arg0: i32) -> (i32, i32) {
    %c0_i32 = arith.constant 0 : i32
    %c0_i32_0 = arith.constant 0 : i32
    return %arg0, %c0_i32 : i32, i32
  }
  func.func @transform_1(%arg0: i32) -> (i32, i32) {
    %c1_i32 = arith.constant 1 : i32
    %0 = arith.addi %arg0, %c1_i32 : i32
    %c0_i32 = arith.constant 0 : i32
    %c0_i32_0 = arith.constant 0 : i32
    return %0, %c0_i32 : i32, i32
  }
  func.func @transform_2(%arg0: i32) -> (i32, i32, i32) {
    %c0_i32 = arith.constant 0 : i32
    %c0_i32_0 = arith.constant 0 : i32
    %c0_i32_1 = arith.constant 0 : i32
    %c0_i32_2 = arith.constant 0 : i32
    return %c0_i32, %c0_i32_0, %c0_i32_1 : i32, i32, i32
  }
  func.func @transform_3(%arg0: i32) -> (i32, i32) {
    %c0_i32 = arith.constant 0 : i32
    %c0_i32_0 = arith.constant 0 : i32
    return %arg0, %c0_i32 : i32, i32
  }
  func.func @transform_4(%arg0: i32) -> (i32, i32) {
    %c0_i32 = arith.constant 0 : i32
    %c0_i32_0 = arith.constant 0 : i32
    return %arg0, %c0_i32 : i32, i32
  }
  func.func @transform_5(%arg0: i32) -> (i32, i32, i32) {
    %c0_i32 = arith.constant 0 : i32
    %c0_i32_0 = arith.constant 0 : i32
    %c0_i32_1 = arith.constant 0 : i32
    return %arg0, %c0_i32, %c0_i32_0 : i32, i32, i32
  }
}

</mosaic_0001>

<llo_original>
// kernel: tpu_custom_call.1
$region0: #{tpu_custom_call.1}
  #allocation0 [shape = 'u32[]', space=smem, size = 0x4, offset = 0x4, fixed_abs, tag = 'smem constant byte address 0x4 - core index']
  #allocation1 [shape = 'u32[144,128]{1,0:T(1,128)}', space=vmem, size = 0x12000, scoped, tag = 'internal scratch']
  #allocation2 [shape = 'bf16[256,4]{1,0:T(16,128)(2,1)}', space=vmem, size = 0x10000, scoped, tag = 'scratch operand']
  #allocation3 [shape = 'f32[128,128]{1,0:T(8,128)}', space=vmem, size = 0x10000, scoped, tag = 'scratch operand']
  %s0 = inlined_call_operand.vmem [shape: bf16[896,4], index: 0, kind: input, shape index: {}]
  %s1 = inlined_call_operand.vmem [shape: bf16[896,4], index: 1, kind: input, shape index: {}]
  %s2 = inlined_call_operand.vmem [shape: bf16[9,4,128], index: 2, kind: input, shape index: {}]
  %s3 = inlined_call_operand.vmem [shape: f32[768,1], index: 3, kind: input, shape index: {}]
  %s4 = inlined_call_operand.hbm [shape: bf16[768,128], index: 4, kind: output, shape index: {0}]
  %s5 = inlined_call_operand.hbm [shape: f32[6,2,128], index: 5, kind: output, shape index: {1}]
  %6 = xla_tuple %s4, %s5
  %s7 = sld [smem:[#allocation0]]
  $region57: #{tpu_custom_call.1} parent=0
    _
  %s9 = ssub.s32 1, %s7
  %s10 = scalar_select 0, %s9, %s7
  $region1: #{tpu_custom_call.1} parent=0
    #allocation4 [shape = 'u8[65536]{0}', space=vmem, size = 0x10000, scoped, tag = 'output window, operand 0']
    #allocation5 [shape = 's32[2]{0}', space=sflag, size = 0x8, scoped, tag = 'scoped memory for tpu_custom_call.1']
    #allocation6 [shape = 'u8[2048]{0}', space=vmem, size = 0x800, scoped, tag = 'output window, operand 1']
    #allocation7 [shape = 's32[2]{0}', space=sflag, size = 0x8, scoped, tag = 'scoped memory for tpu_custom_call.1']
    %11 = vsyncpa [#allocation5], 0
    %s12 = scalar_lea.sflag [#allocation5], 1
    %13 = vsyncpa %s12, 0
    %14 = vsyncpa [#allocation7], 0
    %s15 = scalar_lea.sflag [#allocation7], 1
    %16 = vsyncpa %s15, 0
    loop: start=0, step=1, limit=8
    $region2: #{tpu_custom_call.1} parent=1 // loop_pre_header
      _
    $region3: #{tpu_custom_call.1} parent=1 // loop_header
      %s18 = sphi 0, %s22
      %p19 = scmp.ge.s32.totalorder %s18, 8
      %s28 = sphi 0, %s30
      %s31 = sphi 0, %s28
      %s32 = sphi 0, %s31
      %s48 = sphi 0, %s32
      %s56 = sphi 0, %s58
      %s59 = sphi 0, %s56
      %s60 = sphi 0, %s59
      %s76 = sphi 0, %s60
      %s80 = sphi 0, %s80
      %s82 = sphi 0, %s80
      %s83 = sphi 0, %s82
      %s97 = sphi 0, %s83
      %s103 = sphi 0, %s105
      %s106 = sphi 0, %s103
      %s107 = sphi 0, %s106
      %s123 = sphi 0, %s107
      %s129 = sphi 0, %s131
      %s132 = sphi 0, %s129
      %s133 = sphi 0, %s132
      %s149 = sphi 0, %s133
      %s155 = sphi 0, %s157
      %s158 = sphi 0, %s155
      %s159 = sphi 0, %s158
      %s175 = sphi 0, %s159
    $region4: #{tpu_custom_call.1} parent=1 // loop_header_branch
      %21 = sbr.rel (%p19) target = $region8
    $region5: #{tpu_custom_call.1} parent=1 // loop_body
      %s23 = ssub.s32 %s18, 1
      %s24 = ssub.s32 %s18, 2
      %s25 = sadd.s32 %s18, 1
      %s26 = ssub.s32 %s18, %s25
      %p27 = scmp.eq.s32.totalorder %s26, 0
      %s29 = sadd.s32 %s28, 1
      %s30 = scalar_select %p27, %s28, %s29
      %p33 = pneg %p27
      %p34 = scmp.eq.s32.totalorder %s18, 5
      %p35 = por %p33, %p34
      %p36 = scmp.ne.s32.totalorder %s28, %s31
      %p37 = scmp.eq.s32.totalorder %s18, 0
      %p38 = por %p36, %p37
      %p39 = scmp.ne.s32.totalorder %s28, %s31
      %p40 = scmp.eq.s32.totalorder %s23, 5
      %p41 = por %p39, %p40
      %p42 = scmp.ne.s32.totalorder %s31, %s32
      %p43 = scmp.eq.s32.totalorder %s23, 0
      %p44 = por %p42, %p43
      %p45 = scmp.ne.s32.totalorder %s31, %s32
      %p46 = scmp.eq.s32.totalorder %s24, 5
      %p47 = por %p45, %p46
      %p49 = scmp.ne.s32.totalorder %s32, %s48
      %p50 = scmp.eq.s32.totalorder %s24, 0
      %p51 = por %p49, %p50
      %s52 = sadd.s32 %s18, 1
      %s53 = sadd.s32 %s25, 1
      %s54 = ssub.s32 %s52, %s53
      %p55 = scmp.eq.s32.totalorder %s54, 0
      %s57 = sadd.s32 %s56, 1
      %s58 = scalar_select %p55, %s56, %s57
      %p61 = pneg %p55
      %p62 = scmp.eq.s32.totalorder %s18, 5
      %p63 = por %p61, %p62
      %p64 = scmp.ne.s32.totalorder %s56, %s59
      %p65 = scmp.eq.s32.totalorder %s18, 0
      %p66 = por %p64, %p65
      %p67 = scmp.ne.s32.totalorder %s56, %s59
      %p68 = scmp.eq.s32.totalorder %s23, 5
      %p69 = por %p67, %p68
      %p70 = scmp.ne.s32.totalorder %s59, %s60
      %p71 = scmp.eq.s32.totalorder %s23, 0
      %p72 = por %p70, %p71
      %p73 = scmp.ne.s32.totalorder %s59, %s60
      %p74 = scmp.eq.s32.totalorder %s24, 5
      %p75 = por %p73, %p74
      %p77 = scmp.ne.s32.totalorder %s60, %s76
      %p78 = scmp.eq.s32.totalorder %s24, 0
      %p79 = por %p77, %p78
      %s81 = sadd.s32 %s80, 1
      %p84 = scmp.eq.s32.totalorder %s18, 5
      %p85 = scmp.ne.s32.totalorder %s80, %s82
      %p86 = scmp.eq.s32.totalorder %s18, 0
      %p87 = por %p85, %p86
      %p88 = scmp.ne.s32.totalorder %s80, %s82
      %p89 = scmp.eq.s32.totalorder %s23, 5
      %p90 = por %p88, %p89
      %p91 = scmp.ne.s32.totalorder %s82, %s83
      %p92 = scmp.eq.s32.totalorder %s23, 0
      %p93 = por %p91, %p92
      %p94 = scmp.ne.s32.totalorder %s82, %s83
      %p95 = scmp.eq.s32.totalorder %s24, 5
      %p96 = por %p94, %p95
      %p98 = scmp.ne.s32.totalorder %s83, %s97
      %p99 = scmp.eq.s32.totalorder %s24, 0
      %p100 = por %p98, %p99
      %s101 = ssub.s32 %s18, %s25
      %p102 = scmp.eq.s32.totalorder %s101, 0
      %s104 = sadd.s32 %s103, 1
      %s105 = scalar_select %p102, %s103, %s104
      %p108 = pneg %p102
      %p109 = scmp.eq.s32.totalorder %s18, 5
      %p110 = por %p108, %p109
      %p111 = scmp.ne.s32.totalorder %s103, %s106
      %p112 = scmp.eq.s32.totalorder %s18, 0
      %p113 = por %p111, %p112
      %p114 = scmp.ne.s32.totalorder %s103, %s106
      %p115 = scmp.eq.s32.totalorder %s23, 5
      %p116 = por %p114, %p115
      %p117 = scmp.ne.s32.totalorder %s106, %s107
      %p118 = scmp.eq.s32.totalorder %s23, 0
      %p119 = por %p117, %p118
      %p120 = scmp.ne.s32.totalorder %s106, %s107
      %p121 = scmp.eq.s32.totalorder %s24, 5
      %p122 = por %p120, %p121
      %p124 = scmp.ne.s32.totalorder %s107, %s123
      %p125 = scmp.eq.s32.totalorder %s24, 0
      %p126 = por %p124, %p125
      %s127 = ssub.s32 %s18, %s25
      %p128 = scmp.eq.s32.totalorder %s127, 0
      %s130 = sadd.s32 %s129, 1
      %s131 = scalar_select %p128, %s129, %s130
      %p134 = pneg %p128
      %p135 = scmp.eq.s32.totalorder %s18, 5
      %p136 = por %p134, %p135
      %p137 = scmp.ne.s32.totalorder %s129, %s132
      %p138 = scmp.eq.s32.totalorder %s18, 0
      %p139 = por %p137, %p138
      %p140 = scmp.ne.s32.totalorder %s129, %s132
      %p141 = scmp.eq.s32.totalorder %s23, 5
      %p142 = por %p140, %p141
      %p143 = scmp.ne.s32.totalorder %s132, %s133
      %p144 = scmp.eq.s32.totalorder %s23, 0
      %p145 = por %p143, %p144
      %p146 = scmp.ne.s32.totalorder %s132, %s133
      %p147 = scmp.eq.s32.totalorder %s24, 5
      %p148 = por %p146, %p147
      %p150 = scmp.ne.s32.totalorder %s133, %s149
      %p151 = scmp.eq.s32.totalorder %s24, 0
      %p152 = por %p150, %p151
      %s153 = ssub.s32 %s18, %s25
      %p154 = scmp.eq.s32.totalorder %s153, 0
      %s156 = sadd.s32 %s155, 1
      %s157 = scalar_select %p154, %s155, %s156
      %p160 = pneg %p154
      %p161 = scmp.eq.s32.totalorder %s18, 5
      %p162 = por %p160, %p161
      %p163 = scmp.ne.s32.totalorder %s155, %s158
      %p164 = scmp.eq.s32.totalorder %s18, 0
      %p165 = por %p163, %p164
      %p166 = scmp.ne.s32.totalorder %s155, %s158
      %p167 = scmp.eq.s32.totalorder %s23, 5
      %p168 = por %p166, %p167
      %p169 = scmp.ne.s32.totalorder %s158, %s159
      %p170 = scmp.eq.s32.totalorder %s23, 0
      %p171 = por %p169, %p170
      %p172 = scmp.ne.s32.totalorder %s158, %s159
      %p173 = scmp.eq.s32.totalorder %s24, 5
      %p174 = por %p172, %p173
      %p176 = scmp.ne.s32.totalorder %s159, %s175
      %p177 = scmp.eq.s32.totalorder %s24, 0
      %p178 = por %p176, %p177
      %p179 = scmp.le.s32.totalorder 1, %s18
      %p180 = scmp.lt.s32.totalorder %s18, 7
      %p181 = pnand %p179, %p180
      %p182 = pneg %p181
      // Predicated region
      $region9: #{tpu_custom_call.1} parent=5 // pred_check
        _
      $region10: #{tpu_custom_call.1} parent=5 // pred_check_branch
        %184 = sbr.rel (%p181) target = $region12
      $region11: #{tpu_custom_call.1} parent=5 // pred_region
        %s185 = ssub.s32 %s18, 1
        // Predicated region
        $region13: #{tpu_custom_call.1} parent=11 // pred_check
          %p186 = pneg %p93
        $region14: #{tpu_custom_call.1} parent=11 // pred_check_branch
          %188 = sbr.rel (%p186) target = $region16
        $region15: #{tpu_custom_call.1} parent=11 // pred_region
          _
        $region16: #{tpu_custom_call.1} parent=11 // pred_fallthru
          _
      $region12: #{tpu_custom_call.1} parent=5 // pred_fallthru
        _
      %p189 = scmp.lt.s32.totalorder %s18, 6
      // Predicated region
      $region17: #{tpu_custom_call.1} parent=5 // pred_check
        %p190 = pneg %p189
      $region18: #{tpu_custom_call.1} parent=5 // pred_check_branch
        %192 = sbr.rel (%p190) target = $region20
      $region19: #{tpu_custom_call.1} parent=5 // pred_region
        // Predicated region
        $region21: #{tpu_custom_call.1} parent=19 // pred_check
          %p193 = pneg %p38
        $region22: #{tpu_custom_call.1} parent=19 // pred_check_branch
          %195 = sbr.rel (%p193) target = $region24
        $region23: #{tpu_custom_call.1} parent=19 // pred_region
          %s196 = smul.u32 16, %s18
          %p197 = scmp.lt.s32.totalorder %s196, 111
          %s198 = scalar_select %p197, %s196, 111
          %s199 = smul.addr %s198, 4
          %s200 = scalar_lea.vmem %s0, %s199
          %s201 = smul.u32 16, %s18
        $region24: #{tpu_custom_call.1} parent=19 // pred_fallthru
          _
        // Predicated region
        $region25: #{tpu_custom_call.1} parent=19 // pred_check
          %p202 = pneg %p66
        $region26: #{tpu_custom_call.1} parent=19 // pred_check_branch
          %204 = sbr.rel (%p202) target = $region28
        $region27: #{tpu_custom_call.1} parent=19 // pred_region
          %s205 = sadd.s32 %s18, 1
          %s206 = smul.u32 16, %s205
          %p207 = scmp.lt.s32.totalorder %s206, 111
          %s208 = scalar_select %p207, %s206, 111
          %s209 = smul.addr %s208, 4
          %s210 = scalar_lea.vmem %s1, %s209
          %s211 = sadd.s32 %s18, 1
          %s212 = smul.u32 16, %s211
        $region28: #{tpu_custom_call.1} parent=19 // pred_fallthru
          _
        // Predicated region
        $region29: #{tpu_custom_call.1} parent=19 // pred_check
          %p213 = pneg %p113
        $region30: #{tpu_custom_call.1} parent=19 // pred_check_branch
          %215 = sbr.rel (%p213) target = $region32
        $region31: #{tpu_custom_call.1} parent=19 // pred_region
          %s216 = smul.u32 16, %s18
          %p217 = scmp.lt.s32.totalorder %s216, 95
          %s218 = scalar_select %p217, %s216, 95
          %s219 = smul.addr %s218, 8
          %s220 = scalar_lea.vmem %s3, %s219
          %s221 = smul.u32 16, %s18
        $region32: #{tpu_custom_call.1} parent=19 // pred_fallthru
          _
      $region20: #{tpu_custom_call.1} parent=5 // pred_fallthru
        _
      %p222 = scmp.le.s32.totalorder 1, %s18
      %p223 = scmp.lt.s32.totalorder %s18, 7
      %p224 = pnand %p222, %p223
      %p225 = pneg %p224
      // Predicated region
      $region33: #{tpu_custom_call.1} parent=5 // pred_check
        _
      $region34: #{tpu_custom_call.1} parent=5 // pred_check_branch
        %227 = sbr.rel (%p224) target = $region36
      $region35: #{tpu_custom_call.1} parent=5 // pred_region
        %s228 = ssub.s32 %s18, 1
        %s229 = smul.u32 16, %s23
        %p230 = scmp.lt.s32.totalorder %s229, 111
        %s231 = scalar_select %p230, %s229, 111
        %s232 = smul.addr %s231, 4
        %s233 = scalar_lea.vmem %s0, %s232
        %p234 = pneg %p44
        %p235 = pneg %p41
        %s236 = sadd.s32 %s23, 1
        %s237 = smul.u32 16, %s236
        %p238 = scmp.lt.s32.totalorder %s237, 111
        %s239 = scalar_select %p238, %s237, 111
        %s240 = smul.addr %s239, 4
        %s241 = scalar_lea.vmem %s1, %s240
        %p242 = pneg %p72
        %p243 = pneg %p69
        %p244 = pneg %p93
        %p245 = pneg %p90
        %s246 = smul.u32 16, %s23
        %p247 = scmp.lt.s32.totalorder %s246, 95
        %s248 = scalar_select %p247, %s246, 95
        %s249 = smul.addr %s248, 8
        %s250 = scalar_lea.vmem %s3, %s249
        %p251 = pneg %p119
        %p252 = pneg %p116
        %p253 = pneg %p145
        %p254 = pneg %p142
        %s255 = sand.u32 %s132, 1
        %s256 = scalar_lea.sflag [#allocation5], %s255
        %s257 = sand.u32 %s132, 1
        %s258 = smul.addr %s257, 64
        %s259 = scalar_lea.vmem [#allocation4], %s258
        %p260 = pneg %p171
        %p261 = pneg %p168
        %s262 = sand.u32 %s158, 1
        %s263 = scalar_lea.sflag [#allocation7], %s262
        %s264 = sand.u32 %s158, 1
        %s265 = smul.addr %s264, 2
        %s266 = scalar_lea.vmem [#allocation6], %s265
        %s267 = smul.u32 16, %s23
        %p268 = scmp.lt.s32.totalorder %s267, 111
        %s269 = scalar_select %p268, %s267, 111
        %s270 = smul.addr %s269, 4
        %s271 = scalar_lea.vmem %s0, %s270
        %s272 = smul.u32 16, %s23
        %s273 = sadd.s32 %s23, 1
        %s274 = smul.u32 16, %s273
        %p275 = scmp.lt.s32.totalorder %s274, 111
        %s276 = scalar_select %p275, %s274, 111
        %s277 = smul.addr %s276, 4
        %s278 = scalar_lea.vmem %s1, %s277
        %s279 = sadd.s32 %s23, 1
        %s280 = smul.u32 16, %s279
        %s281 = smul.u32 16, %s23
        %p282 = scmp.lt.s32.totalorder %s281, 95
        %s283 = scalar_select %p282, %s281, 95
        %s284 = smul.addr %s283, 8
        %s285 = scalar_lea.vmem %s3, %s284
        %s286 = smul.u32 16, %s23
        %s287 = smul.u32 16, %s23
        %v289 = vld [vmem:[%s271] sm:$0xf]
        %v290 = vld [vmem:[%s271 + $0x4] sm:$0xf]
        %v291 = vld [vmem:[%s271 + $0x8] sm:$0xf]
        %v292 = vld [vmem:[%s271 + $0xc] sm:$0xf]
        %v293 = vld [vmem:[%s271 + $0x10] sm:$0xf]
        %v294 = vld [vmem:[%s271 + $0x14] sm:$0xf]
        %v295 = vld [vmem:[%s271 + $0x18] sm:$0xf]
        %v296 = vld [vmem:[%s271 + $0x1c] sm:$0xf]
        %v297 = vld [vmem:[%s271 + $0x20] sm:$0xf]
        %v298 = vld [vmem:[%s271 + $0x24] sm:$0xf]
        %v299 = vld [vmem:[%s271 + $0x28] sm:$0xf]
        %v300 = vld [vmem:[%s271 + $0x2c] sm:$0xf]
        %v301 = vld [vmem:[%s271 + $0x30] sm:$0xf]
        %v302 = vld [vmem:[%s271 + $0x34] sm:$0xf]
        %v303 = vld [vmem:[%s271 + $0x38] sm:$0xf]
        %v304 = vld [vmem:[%s271 + $0x3c] sm:$0xf]
        %v321 = vunpack.c.l.b16 %v289
        %v322 = vunpack.c.l.b16 %v290
        %v323 = vunpack.c.l.b16 %v291
        %v324 = vunpack.c.l.b16 %v292
        %v325 = vunpack.c.l.b16 %v293
        %v326 = vunpack.c.l.b16 %v294
        %v327 = vunpack.c.l.b16 %v295
        %v328 = vunpack.c.l.b16 %v296
        %v329 = vunpack.c.l.b16 %v297
        %v330 = vunpack.c.l.b16 %v298
        %v331 = vunpack.c.l.b16 %v299
        %v332 = vunpack.c.l.b16 %v300
        %v333 = vunpack.c.l.b16 %v301
        %v334 = vunpack.c.l.b16 %v302
        %v335 = vunpack.c.l.b16 %v303
        %v336 = vunpack.c.l.b16 %v304
        %v337 = vpack.c.b16 %v322, %v321
        %v338 = vpack.c.b16 %v324, %v323
        %v339 = vpack.c.b16 %v326, %v325
        %v340 = vpack.c.b16 %v328, %v327
        %v341 = vpack.c.b16 %v330, %v329
        %v342 = vpack.c.b16 %v332, %v331
        %v343 = vpack.c.b16 %v334, %v333
        %v344 = vpack.c.b16 %v336, %v335
        %vm353 = vcmask 31744
        %354 = vst.msk [vmem:[#allocation2] sm:$0xff] %vm353, %v337
        %355 = vst.msk [vmem:[#allocation2 + $0x8] sm:$0xff] %vm353, %v338
        %356 = vst.msk [vmem:[#allocation2 + $0x10] sm:$0xff] %vm353, %v339
        %357 = vst.msk [vmem:[#allocation2 + $0x18] sm:$0xff] %vm353, %v340
        %358 = vst.msk [vmem:[#allocation2 + $0x20] sm:$0xff] %vm353, %v341
        %359 = vst.msk [vmem:[#allocation2 + $0x28] sm:$0xff] %vm353, %v342
        %360 = vst.msk [vmem:[#allocation2 + $0x30] sm:$0xff] %vm353, %v343
        %361 = vst.msk [vmem:[#allocation2 + $0x38] sm:$0xff] %vm353, %v344
        %v362 = vld [vmem:[%s278] sm:$0xf]
        %v363 = vld [vmem:[%s278 + $0x4] sm:$0xf]
        %v364 = vld [vmem:[%s278 + $0x8] sm:$0xf]
        %v365 = vld [vmem:[%s278 + $0xc] sm:$0xf]
        %v366 = vld [vmem:[%s278 + $0x10] sm:$0xf]
        %v367 = vld [vmem:[%s278 + $0x14] sm:$0xf]
        %v368 = vld [vmem:[%s278 + $0x18] sm:$0xf]
        %v369 = vld [vmem:[%s278 + $0x1c] sm:$0xf]
        %v370 = vld [vmem:[%s278 + $0x20] sm:$0xf]
        %v371 = vld [vmem:[%s278 + $0x24] sm:$0xf]
        %v372 = vld [vmem:[%s278 + $0x28] sm:$0xf]
        %v373 = vld [vmem:[%s278 + $0x2c] sm:$0xf]
        %v374 = vld [vmem:[%s278 + $0x30] sm:$0xf]
        %v375 = vld [vmem:[%s278 + $0x34] sm:$0xf]
        %v376 = vld [vmem:[%s278 + $0x38] sm:$0xf]
        %v377 = vld [vmem:[%s278 + $0x3c] sm:$0xf]
        %v394 = vunpack.c.l.b16 %v362
        %v395 = vunpack.c.l.b16 %v363
        %v396 = vunpack.c.l.b16 %v364
        %v397 = vunpack.c.l.b16 %v365
        %v398 = vunpack.c.l.b16 %v366
        %v399 = vunpack.c.l.b16 %v367
        %v400 = vunpack.c.l.b16 %v368
        %v401 = vunpack.c.l.b16 %v369
        %v402 = vunpack.c.l.b16 %v370
        %v403 = vunpack.c.l.b16 %v371
        %v404 = vunpack.c.l.b16 %v372
        %v405 = vunpack.c.l.b16 %v373
        %v406 = vunpack.c.l.b16 %v374
        %v407 = vunpack.c.l.b16 %v375
        %v408 = vunpack.c.l.b16 %v376
        %v409 = vunpack.c.l.b16 %v377
        %v410 = vpack.c.b16 %v395, %v394
        %v411 = vpack.c.b16 %v397, %v396
        %v412 = vpack.c.b16 %v399, %v398
        %v413 = vpack.c.b16 %v401, %v400
        %v414 = vpack.c.b16 %v403, %v402
        %v415 = vpack.c.b16 %v405, %v404
        %v416 = vpack.c.b16 %v407, %v406
        %v417 = vpack.c.b16 %v409, %v408
        %426 = vst.msk [vmem:[#allocation2 + $0x40] sm:$0xff] %vm353, %v410
        %427 = vst.msk [vmem:[#allocation2 + $0x48] sm:$0xff] %vm353, %v411
        %428 = vst.msk [vmem:[#allocation2 + $0x50] sm:$0xff] %vm353, %v412
        %429 = vst.msk [vmem:[#allocation2 + $0x58] sm:$0xff] %vm353, %v413
        %430 = vst.msk [vmem:[#allocation2 + $0x60] sm:$0xff] %vm353, %v414
        %431 = vst.msk [vmem:[#allocation2 + $0x68] sm:$0xff] %vm353, %v415
        %432 = vst.msk [vmem:[#allocation2 + $0x70] sm:$0xff] %vm353, %v416
        %433 = vst.msk [vmem:[#allocation2 + $0x78] sm:$0xff] %vm353, %v417
        %v434 = vld [vmem:[#allocation2] sm:$0xff]
        %v435 = vld [vmem:[#allocation2 + $0x8] sm:$0xff]
        %v436 = vld [vmem:[#allocation2 + $0x10] sm:$0xff]
        %v437 = vld [vmem:[#allocation2 + $0x18] sm:$0xff]
        %v438 = vld [vmem:[#allocation2 + $0x20] sm:$0xff]
        %v439 = vld [vmem:[#allocation2 + $0x28] sm:$0xff]
        %v440 = vld [vmem:[#allocation2 + $0x30] sm:$0xff]
        %v441 = vld [vmem:[#allocation2 + $0x38] sm:$0xff]
        %v442 = vld [vmem:[%s2] sm:$0x3]
        %v444 = vsel %vm353, %v434, 0
        %v447 = vsel %vm353, %v435, 0
        %v450 = vsel %vm353, %v436, 0
        %v453 = vsel %vm353, %v437, 0
        %v456 = vsel %vm353, %v438, 0
        %v459 = vsel %vm353, %v439, 0
        %v462 = vsel %vm353, %v440, 0
        %v465 = vsel %vm353, %v441, 0
        %vm467 = vcmask 1041408
        %v469 = vsel %vm467, %v442, 0
        %471 = vmatprep.subr.bf16.mxu0 0
        %472 = vmatpush1.bf16.msra.mxu0 %v469
        %473 = vmatprep.subr.bf16.mxu0 0
        %474 = vmatpush1.bf16.msra.mxu0 0
        %475 = vmatprep.subr.bf16.mxu0 0
        %476 = vmatpush1.bf16.msra.mxu0 0
        %477 = vmatprep.subr.bf16.mxu0 0
        %478 = vmatpush1.bf16.msra.mxu0 0
        %479 = vmatprep.subr.bf16.mxu0 0
        %480 = vmatpush1.bf16.msra.mxu0 0
        %481 = vmatprep.subr.bf16.mxu0 0
        %482 = vmatpush1.bf16.msra.mxu0 0
        %483 = vmatprep.subr.bf16.mxu0 0
        %484 = vmatpush1.bf16.msra.mxu0 0
        %485 = vmatprep.subr.bf16.mxu0 0
        %486 = vmatpush1.bf16.msra.mxu0 0
        %487 = vmatprep.subr.bf16.mxu0 0
        %488 = vmatpush1.bf16.msra.mxu0 0
        %489 = vmatprep.subr.bf16.mxu0 0
        %490 = vmatpush1.bf16.msra.mxu0 0
        %491 = vmatprep.subr.bf16.mxu0 0
        %492 = vmatpush1.bf16.msra.mxu0 0
        %493 = vmatprep.subr.bf16.mxu0 0
        %494 = vmatpush1.bf16.msra.mxu0 0
        %495 = vmatprep.subr.bf16.mxu0 0
        %496 = vmatpush1.bf16.msra.mxu0 0
        %497 = vmatprep.subr.bf16.mxu0 0
        %498 = vmatpush1.bf16.msra.mxu0 0
        %499 = vmatprep.subr.bf16.mxu0 0
        %500 = vmatpush1.bf16.msra.mxu0 0
        %501 = vmatprep.subr.bf16.mxu0 0
        %502 = vmatpush1.bf16.msra.mxu0 0
        %503 = vmatprep.mubr.bf16.mxu0 0
        %504 = vmatmul.mubr.bf16.gmra.mrb[0].mxu0 %v444
        %v505 = vpop.f32.mrb[0].mxu0
        %v506 = vadd.f32 0.0, %v505
        %v507 = vpop.f32.mrb[0].mxu0
        %v508 = vpop.f32.mrb[0].mxu0
        %v509 = vadd.f32 0.0, %v508
        %v510 = vpop.f32.mrb[0].mxu0
        %511 = vmatprep.mubr.bf16.mxu0 0
        %512 = vmatmul.mubr.bf16.gmra.mrb[0].mxu0 %v447
        %v513 = vpop.f32.mrb[0].mxu0
        %v514 = vadd.f32 0.0, %v513
        %v515 = vpop.f32.mrb[0].mxu0
        %v516 = vpop.f32.mrb[0].mxu0
        %v517 = vadd.f32 0.0, %v516
        %v518 = vpop.f32.mrb[0].mxu0
        %519 = vmatprep.mubr.bf16.mxu0 0
        %520 = vmatmul.mubr.bf16.gmra.mrb[0].mxu0 %v450
        %v521 = vpop.f32.mrb[0].mxu0
        %v522 = vadd.f32 0.0, %v521
        %v523 = vpop.f32.mrb[0].mxu0
        %v524 = vpop.f32.mrb[0].mxu0
        %v525 = vadd.f32 0.0, %v524
        %v526 = vpop.f32.mrb[0].mxu0
        %527 = vmatprep.mubr.bf16.mxu0 0
        %528 = vmatmul.mubr.bf16.gmra.mrb[0].mxu0 %v453
        %v529 = vpop.f32.mrb[0].mxu0
        %v530 = vadd.f32 0.0, %v529
        %v531 = vpop.f32.mrb[0].mxu0
        %v532 = vpop.f32.mrb[0].mxu0
        %v533 = vadd.f32 0.0, %v532
        %v534 = vpop.f32.mrb[0].mxu0
        %535 = vmatprep.mubr.bf16.mxu0 0
        %536 = vmatmul.mubr.bf16.gmra.mrb[0].mxu0 %v456
        %v537 = vpop.f32.mrb[0].mxu0
        %v538 = vadd.f32 0.0, %v537
        %v539 = vpop.f32.mrb[0].mxu0
        %v540 = vpop.f32.mrb[0].mxu0
        %v541 = vadd.f32 0.0, %v540
        %v542 = vpop.f32.mrb[0].mxu0
        %543 = vmatprep.mubr.bf16.mxu0 0
        %544 = vmatmul.mubr.bf16.gmra.mrb[0].mxu0 %v459
        %v545 = vpop.f32.mrb[0].mxu0
        %v546 = vadd.f32 0.0, %v545
        %v547 = vpop.f32.mrb[0].mxu0
        %v548 = vpop.f32.mrb[0].mxu0
        %v549 = vadd.f32 0.0, %v548
        %v550 = vpop.f32.mrb[0].mxu0
        %551 = vmatprep.mubr.bf16.mxu0 0
        %552 = vmatmul.mubr.bf16.gmra.mrb[0].mxu0 %v462
        %v553 = vpop.f32.mrb[0].mxu0
        %v554 = vadd.f32 0.0, %v553
        %v555 = vpop.f32.mrb[0].mxu0
        %v556 = vpop.f32.mrb[0].mxu0
        %v557 = vadd.f32 0.0, %v556
        %v558 = vpop.f32.mrb[0].mxu0
        %559 = vmatprep.mubr.bf16.mxu0 0
        %560 = vmatmul.mubr.bf16.gmra.mrb[0].mxu0 %v465
        %v561 = vpop.f32.mrb[0].mxu0
        %v562 = vadd.f32 0.0, %v561
        %v563 = vpop.f32.mrb[0].mxu0
        %v564 = vpop.f32.mrb[0].mxu0
        %v565 = vadd.f32 0.0, %v564
        %v566 = vpop.f32.mrb[0].mxu0
        %567 = vdwg.mxu0
        %568 = vst [vmem:[#allocation3] sm:$0xff] %v506
        %569 = vst [vmem:[#allocation3 + $0x8] sm:$0xff] %v509
        %570 = vst [vmem:[#allocation3 + $0x10] sm:$0xff] %v514
        %571 = vst [vmem:[#allocation3 + $0x18] sm:$0xff] %v517
        %572 = vst [vmem:[#allocation3 + $0x20] sm:$0xff] %v522
        %573 = vst [vmem:[#allocation3 + $0x28] sm:$0xff] %v525
        %574 = vst [vmem:[#allocation3 + $0x30] sm:$0xff] %v530
        %575 = vst [vmem:[#allocation3 + $0x38] sm:$0xff] %v533
        %576 = vst [vmem:[#allocation3 + $0x40] sm:$0xff] %v538
        %577 = vst [vmem:[#allocation3 + $0x48] sm:$0xff] %v541
        %578 = vst [vmem:[#allocation3 + $0x50] sm:$0xff] %v546
        %579 = vst [vmem:[#allocation3 + $0x58] sm:$0xff] %v549
        %580 = vst [vmem:[#allocation3 + $0x60] sm:$0xff] %v554
        %581 = vst [vmem:[#allocation3 + $0x68] sm:$0xff] %v557
        %582 = vst [vmem:[#allocation3 + $0x70] sm:$0xff] %v562
        %583 = vst [vmem:[#allocation3 + $0x78] sm:$0xff] %v565
        %v584 = vld [vmem:[#allocation3] sm:$0xff]
        %v585 = vld [vmem:[#allocation3 + $0x8] sm:$0xff]
        %v586 = vld [vmem:[#allocation3 + $0x10] sm:$0xff]
        %v587 = vld [vmem:[#allocation3 + $0x18] sm:$0xff]
        %v588 = vld [vmem:[#allocation3 + $0x20] sm:$0xff]
        %v589 = vld [vmem:[#allocation3 + $0x28] sm:$0xff]
        %v590 = vld [vmem:[#allocation3 + $0x30] sm:$0xff]
        %v591 = vld [vmem:[#allocation3 + $0x38] sm:$0xff]
        %v592 = vld [vmem:[#allocation3 + $0x40] sm:$0xff]
        %v593 = vld [vmem:[#allocation3 + $0x48] sm:$0xff]
        %v594 = vld [vmem:[#allocation3 + $0x50] sm:$0xff]
        %v595 = vld [vmem:[#allocation3 + $0x58] sm:$0xff]
        %v596 = vld [vmem:[#allocation3 + $0x60] sm:$0xff]
        %v597 = vld [vmem:[#allocation3 + $0x68] sm:$0xff]
        %v598 = vld [vmem:[#allocation3 + $0x70] sm:$0xff]
        %v599 = vld [vmem:[#allocation3 + $0x78] sm:$0xff]
        %v600 = vld [vmem:[#allocation2] sm:$0xff]
        %v601 = vld [vmem:[#allocation2 + $0x8] sm:$0xff]
        %v602 = vld [vmem:[#allocation2 + $0x10] sm:$0xff]
        %v603 = vld [vmem:[#allocation2 + $0x18] sm:$0xff]
        %v604 = vld [vmem:[#allocation2 + $0x20] sm:$0xff]
        %v605 = vld [vmem:[#allocation2 + $0x28] sm:$0xff]
        %v606 = vld [vmem:[#allocation2 + $0x30] sm:$0xff]
        %v607 = vld [vmem:[#allocation2 + $0x38] sm:$0xff]
        %v608 = vld [vmem:[#allocation2 + $0x40] sm:$0x1]
        %s609 = scalar_lea.vmem %s2, 2
        %v610 = vld [vmem:[%s609] sm:$0x3]
        %vm611 = vsmask.f32 7424
        %v613 = vshrl.u32 %v600, 16
        %v615 = vshll.u32 %v600, 16
        %v617 = vrot.slane %v615, 1
        %v618 = vor.u32 %v613, %v617
        %v620 = vshll.u32 %v601, 16
        %v622 = vrot.slane %v620, 1
        %v623 = vsel %vm611, %v618, %v622
        %v624 = vshrl.u32 %v601, 16
        %v626 = vor.u32 %v624, %v622
        %v628 = vshll.u32 %v602, 16
        %v630 = vrot.slane %v628, 1
        %v631 = vsel %vm611, %v626, %v630
        %v632 = vshrl.u32 %v602, 16
        %v634 = vor.u32 %v632, %v630
        %v636 = vshll.u32 %v603, 16
        %v638 = vrot.slane %v636, 1
        %v639 = vsel %vm611, %v634, %v638
        %v640 = vshrl.u32 %v603, 16
        %v642 = vor.u32 %v640, %v638
        %v644 = vshll.u32 %v604, 16
        %v646 = vrot.slane %v644, 1
        %v647 = vsel %vm611, %v642, %v646
        %v648 = vshrl.u32 %v604, 16
        %v650 = vor.u32 %v648, %v646
        %v652 = vshll.u32 %v605, 16
        %v654 = vrot.slane %v652, 1
        %v655 = vsel %vm611, %v650, %v654
        %v656 = vshrl.u32 %v605, 16
        %v658 = vor.u32 %v656, %v654
        %v660 = vshll.u32 %v606, 16
        %v662 = vrot.slane %v660, 1
        %v663 = vsel %vm611, %v658, %v662
        %v664 = vshrl.u32 %v606, 16
        %v666 = vor.u32 %v664, %v662
        %v668 = vshll.u32 %v607, 16
        %v670 = vrot.slane %v668, 1
        %v671 = vsel %vm611, %v666, %v670
        %v672 = vshrl.u32 %v607, 16
        %v674 = vor.u32 %v672, %v670
        %v676 = vshll.u32 %v608, 16
        %v678 = vrot.slane %v676, 1
        %v679 = vsel %vm611, %v674, %v678
        %v681 = vsel %vm353, %v623, 0
        %v684 = vsel %vm353, %v631, 0
        %v687 = vsel %vm353, %v639, 0
        %v690 = vsel %vm353, %v647, 0
        %v693 = vsel %vm353, %v655, 0
        %v696 = vsel %vm353, %v663, 0
        %v699 = vsel %vm353, %v671, 0
        %v702 = vsel %vm353, %v679, 0
        %v705 = vsel %vm467, %v610, 0
        %707 = vmatprep.subr.bf16.mxu0 0
        %708 = vmatpush1.bf16.msra.mxu0 %v705
        %709 = vmatprep.subr.bf16.mxu0 0
        %710 = vmatpush1.bf16.msra.mxu0 0
        %711 = vmatprep.subr.bf16.mxu0 0
        %712 = vmatpush1.bf16.msra.mxu0 0
        %713 = vmatprep.subr.bf16.mxu0 0
        %714 = vmatpush1.bf16.msra.mxu0 0
        %715 = vmatprep.subr.bf16.mxu0 0
        %716 = vmatpush1.bf16.msra.mxu0 0
        %717 = vmatprep.subr.bf16.mxu0 0
        %718 = vmatpush1.bf16.msra.mxu0 0
        %719 = vmatprep.subr.bf16.mxu0 0
        %720 = vmatpush1.bf16.msra.mxu0 0
        %721 = vmatprep.subr.bf16.mxu0 0
        %722 = vmatpush1.bf16.msra.mxu0 0
        %723 = vmatprep.subr.bf16.mxu0 0
        %724 = vmatpush1.bf16.msra.mxu0 0
        %725 = vmatprep.subr.bf16.mxu0 0
        %726 = vmatpush1.bf16.msra.mxu0 0
        %727 = vmatprep.subr.bf16.mxu0 0
        %728 = vmatpush1.bf16.msra.mxu0 0
        %729 = vmatprep.subr.bf16.mxu0 0
        %730 = vmatpush1.bf16.msra.mxu0 0
        %731 = vmatprep.subr.bf16.mxu0 0
        %732 = vmatpush1.bf16.msra.mxu0 0
        %733 = vmatprep.subr.bf16.mxu0 0
        %734 = vmatpush1.bf16.msra.mxu0 0
        %735 = vmatprep.subr.bf16.mxu0 0
        %736 = vmatpush1.bf16.msra.mxu0 0
        %737 = vmatprep.subr.bf16.mxu0 0
        %738 = vmatpush1.bf16.msra.mxu0 0
        %739 = vmatprep.mubr.bf16.mxu0 0
        %740 = vmatmul.mubr.bf16.gmra.mrb[0].mxu0 %v681
        %v741 = vpop.f32.mrb[0].mxu0
        %v742 = vadd.f32 0.0, %v741
        %v743 = vpop.f32.mrb[0].mxu0
        %v744 = vpop.f32.mrb[0].mxu0
        %v745 = vadd.f32 0.0, %v744
        %v746 = vpop.f32.mrb[0].mxu0
        %747 = vmatprep.mubr.bf16.mxu0 0
        %748 = vmatmul.mubr.bf16.gmra.mrb[0].mxu0 %v684
        %v749 = vpop.f32.mrb[0].mxu0
        %v750 = vadd.f32 0.0, %v749
        %v751 = vpop.f32.mrb[0].mxu0
        %v752 = vpop.f32.mrb[0].mxu0
        %v753 = vadd.f32 0.0, %v752
        %v754 = vpop.f32.mrb[0].mxu0
        %755 = vmatprep.mubr.bf16.mxu0 0
        %756 = vmatmul.mubr.bf16.gmra.mrb[0].mxu0 %v687
        %v757 = vpop.f32.mrb[0].mxu0
        %v758 = vadd.f32 0.0, %v757
        %v759 = vpop.f32.mrb[0].mxu0
        %v760 = vpop.f32.mrb[0].mxu0
        %v761 = vadd.f32 0.0, %v760
        %v762 = vpop.f32.mrb[0].mxu0
        %763 = vmatprep.mubr.bf16.mxu0 0
        %764 = vmatmul.mubr.bf16.gmra.mrb[0].mxu0 %v690
        %v765 = vpop.f32.mrb[0].mxu0
        %v766 = vadd.f32 0.0, %v765
        %v767 = vpop.f32.mrb[0].mxu0
        %v768 = vpop.f32.mrb[0].mxu0
        %v769 = vadd.f32 0.0, %v768
        %v770 = vpop.f32.mrb[0].mxu0
        %771 = vmatprep.mubr.bf16.mxu0 0
        %772 = vmatmul.mubr.bf16.gmra.mrb[0].mxu0 %v693
        %v773 = vpop.f32.mrb[0].mxu0
        %v774 = vadd.f32 0.0, %v773
        %v775 = vpop.f32.mrb[0].mxu0
        %v776 = vpop.f32.mrb[0].mxu0
        %v777 = vadd.f32 0.0, %v776
        %v778 = vpop.f32.mrb[0].mxu0
        %779 = vmatprep.mubr.bf16.mxu0 0
        %780 = vmatmul.mubr.bf16.gmra.mrb[0].mxu0 %v696
        %v781 = vpop.f32.mrb[0].mxu0
        %v782 = vadd.f32 0.0, %v781
        %v783 = vpop.f32.mrb[0].mxu0
        %v784 = vpop.f32.mrb[0].mxu0
        %v785 = vadd.f32 0.0, %v784
        %v786 = vpop.f32.mrb[0].mxu0
        %787 = vmatprep.mubr.bf16.mxu0 0
        %788 = vmatmul.mubr.bf16.gmra.mrb[0].mxu0 %v699
        %v789 = vpop.f32.mrb[0].mxu0
        %v790 = vadd.f32 0.0, %v789
        %v791 = vpop.f32.mrb[0].mxu0
        %v792 = vpop.f32.mrb[0].mxu0
        %v793 = vadd.f32 0.0, %v792
        %v794 = vpop.f32.mrb[0].mxu0
        %795 = vmatprep.mubr.bf16.mxu0 0
        %796 = vmatmul.mubr.bf16.gmra.mrb[0].mxu0 %v702
        %v797 = vpop.f32.mrb[0].mxu0
        %v798 = vadd.f32 0.0, %v797
        %v799 = vpop.f32.mrb[0].mxu0
        %v800 = vpop.f32.mrb[0].mxu0
        %v801 = vadd.f32 0.0, %v800
        %v802 = vpop.f32.mrb[0].mxu0
        %803 = vdwg.mxu0
        %v804 = vadd.f32 %v584, %v742
        %v805 = vadd.f32 %v585, %v745
        %v806 = vadd.f32 %v586, %v750
        %v807 = vadd.f32 %v587, %v753
        %v808 = vadd.f32 %v588, %v758
        %v809 = vadd.f32 %v589, %v761
        %v810 = vadd.f32 %v590, %v766
        %v811 = vadd.f32 %v591, %v769
        %v812 = vadd.f32 %v592, %v774
        %v813 = vadd.f32 %v593, %v777
        %v814 = vadd.f32 %v594, %v782
        %v815 = vadd.f32 %v595, %v785
        %v816 = vadd.f32 %v596, %v790
        %v817 = vadd.f32 %v597, %v793
        %v818 = vadd.f32 %v598, %v798
        %v819 = vadd.f32 %v599, %v801
        %820 = vst [vmem:[#allocation3] sm:$0xff] %v804
        %821 = vst [vmem:[#allocation3 + $0x8] sm:$0xff] %v805
        %822 = vst [vmem:[#allocation3 + $0x10] sm:$0xff] %v806
        %823 = vst [vmem:[#allocation3 + $0x18] sm:$0xff] %v807
        %824 = vst [vmem:[#allocation3 + $0x20] sm:$0xff] %v808
        %825 = vst [vmem:[#allocation3 + $0x28] sm:$0xff] %v809
        %826 = vst [vmem:[#allocation3 + $0x30] sm:$0xff] %v810
        %827 = vst [vmem:[#allocation3 + $0x38] sm:$0xff] %v811
        %828 = vst [vmem:[#allocation3 + $0x40] sm:$0xff] %v812
        %829 = vst [vmem:[#allocation3 + $0x48] sm:$0xff] %v813
        %830 = vst [vmem:[#allocation3 + $0x50] sm:$0xff] %v814
        %831 = vst [vmem:[#allocation3 + $0x58] sm:$0xff] %v815
        %832 = vst [vmem:[#allocation3 + $0x60] sm:$0xff] %v816
        %833 = vst [vmem:[#allocation3 + $0x68] sm:$0xff] %v817
        %834 = vst [vmem:[#allocation3 + $0x70] sm:$0xff] %v818
        %835 = vst [vmem:[#allocation3 + $0x78] sm:$0xff] %v819
        %v836 = vld [vmem:[#allocation3] sm:$0xff]
        %v837 = vld [vmem:[#allocation3 + $0x8] sm:$0xff]
        %v838 = vld [vmem:[#allocation3 + $0x10] sm:$0xff]
        %v839 = vld [vmem:[#allocation3 + $0x18] sm:$0xff]
        %v840 = vld [vmem:[#allocation3 + $0x20] sm:$0xff]
        %v841 = vld [vmem:[#allocation3 + $0x28] sm:$0xff]
        %v842 = vld [vmem:[#allocation3 + $0x30] sm:$0xff]
        %v843 = vld [vmem:[#allocation3 + $0x38] sm:$0xff]
        %v844 = vld [vmem:[#allocation3 + $0x40] sm:$0xff]
        %v845 = vld [vmem:[#allocation3 + $0x48] sm:$0xff]
        %v846 = vld [vmem:[#allocation3 + $0x50] sm:$0xff]
        %v847 = vld [vmem:[#allocation3 + $0x58] sm:$0xff]
        %v848 = vld [vmem:[#allocation3 + $0x60] sm:$0xff]
        %v849 = vld [vmem:[#allocation3 + $0x68] sm:$0xff]
        %v850 = vld [vmem:[#allocation3 + $0x70] sm:$0xff]
        %v851 = vld [vmem:[#allocation3 + $0x78] sm:$0xff]
        %v852 = vld [vmem:[#allocation2] sm:$0xfe]
        %v853 = vld [vmem:[#allocation2 + $0x8] sm:$0xff]
        %v854 = vld [vmem:[#allocation2 + $0x10] sm:$0xff]
        %v855 = vld [vmem:[#allocation2 + $0x18] sm:$0xff]
        %v856 = vld [vmem:[#allocation2 + $0x20] sm:$0xff]
        %v857 = vld [vmem:[#allocation2 + $0x28] sm:$0xff]
        %v858 = vld [vmem:[#allocation2 + $0x30] sm:$0xff]
        %v859 = vld [vmem:[#allocation2 + $0x38] sm:$0xff]
        %v860 = vld [vmem:[#allocation2 + $0x40] sm:$0x1]
        %s861 = scalar_lea.vmem %s2, 4
        %v862 = vld [vmem:[%s861] sm:$0x3]
        %vm872 = vcmask 1046528
        %v873 = vrot.slane %v852, 1
        %v874 = vrot.slane %v853, 1
        %v875 = vsel %vm872, %v873, %v874
        %v876 = vrot.slane %v854, 1
        %v877 = vsel %vm872, %v874, %v876
        %v878 = vrot.slane %v855, 1
        %v879 = vsel %vm872, %v876, %v878
        %v880 = vrot.slane %v856, 1
        %v881 = vsel %vm872, %v878, %v880
        %v882 = vrot.slane %v857, 1
        %v883 = vsel %vm872, %v880, %v882
        %v884 = vrot.slane %v858, 1
        %v885 = vsel %vm872, %v882, %v884
        %v886 = vrot.slane %v859, 1
        %v887 = vsel %vm872, %v884, %v886
        %v888 = vrot.slane %v860, 1
        %v889 = vsel %vm872, %v886, %v888
        %v891 = vsel %vm353, %v875, 0
        %v894 = vsel %vm353, %v877, 0
        %v897 = vsel %vm353, %v879, 0
        %v900 = vsel %vm353, %v881, 0
        %v903 = vsel %vm353, %v883, 0
        %v906 = vsel %vm353, %v885, 0
        %v909 = vsel %vm353, %v887, 0
        %v912 = vsel %vm353, %v889, 0
        %v915 = vsel %vm467, %v862, 0
        %917 = vmatprep.subr.bf16.mxu0 0
        %918 = vmatpush1.bf16.msra.mxu0 %v915
        %919 = vmatprep.subr.bf16.mxu0 0
        %920 = vmatpush1.bf16.msra.mxu0 0
        %921 = vmatprep.subr.bf16.mxu0 0
        %922 = vmatpush1.bf16.msra.mxu0 0
        %923 = vmatprep.subr.bf16.mxu0 0
        %924 = vmatpush1.bf16.msra.mxu0 0
        %925 = vmatprep.subr.bf16.mxu0 0
        %926 = vmatpush1.bf16.msra.mxu0 0
        %927 = vmatprep.subr.bf16.mxu0 0
        %928 = vmatpush1.bf16.msra.mxu0 0
        %929 = vmatprep.subr.bf16.mxu0 0
        %930 = vmatpush1.bf16.msra.mxu0 0
        %931 = vmatprep.subr.bf16.mxu0 0
        %932 = vmatpush1.bf16.msra.mxu0 0
        %933 = vmatprep.subr.bf16.mxu0 0
        %934 = vmatpush1.bf16.msra.mxu0 0
        %935 = vmatprep.subr.bf16.mxu0 0
        %936 = vmatpush1.bf16.msra.mxu0 0
        %937 = vmatprep.subr.bf16.mxu0 0
        %938 = vmatpush1.bf16.msra.mxu0 0
        %939 = vmatprep.subr.bf16.mxu0 0
        %940 = vmatpush1.bf16.msra.mxu0 0
        %941 = vmatprep.subr.bf16.mxu0 0
        %942 = vmatpush1.bf16.msra.mxu0 0
        %943 = vmatprep.subr.bf16.mxu0 0
        %944 = vmatpush1.bf16.msra.mxu0 0
        %945 = vmatprep.subr.bf16.mxu0 0
        %946 = vmatpush1.bf16.msra.mxu0 0
        %947 = vmatprep.subr.bf16.mxu0 0
        %948 = vmatpush1.bf16.msra.mxu0 0
        %949 = vmatprep.mubr.bf16.mxu0 0
        %950 = vmatmul.mubr.bf16.gmra.mrb[0].mxu0 %v891
        %v951 = vpop.f32.mrb[0].mxu0
        %v952 = vadd.f32 0.0, %v951
        %v953 = vpop.f32.mrb[0].mxu0
        %v954 = vpop.f32.mrb[0].mxu0
        %v955 = vadd.f32 0.0, %v954
        %v956 = vpop.f32.mrb[0].mxu0
        %957 = vmatprep.mubr.bf16.mxu0 0
        %958 = vmatmul.mubr.bf16.gmra.mrb[0].mxu0 %v894
        %v959 = vpop.f32.mrb[0].mxu0
        %v960 = vadd.f32 0.0, %v959
        %v961 = vpop.f32.mrb[0].mxu0
        %v962 = vpop.f32.mrb[0].mxu0
        %v963 = vadd.f32 0.0, %v962
        %v964 = vpop.f32.mrb[0].mxu0
        %965 = vmatprep.mubr.bf16.mxu0 0
        %966 = vmatmul.mubr.bf16.gmra.mrb[0].mxu0 %v897
        %v967 = vpop.f32.mrb[0].mxu0
        %v968 = vadd.f32 0.0, %v967
        %v969 = vpop.f32.mrb[0].mxu0
        %v970 = vpop.f32.mrb[0].mxu0
        %v971 = vadd.f32 0.0, %v970
        %v972 = vpop.f32.mrb[0].mxu0
        %973 = vmatprep.mubr.bf16.mxu0 0
        %974 = vmatmul.mubr.bf16.gmra.mrb[0].mxu0 %v900
        %v975 = vpop.f32.mrb[0].mxu0
        %v976 = vadd.f32 0.0, %v975
        %v977 = vpop.f32.mrb[0].mxu0
        %v978 = vpop.f32.mrb[0].mxu0
        %v979 = vadd.f32 0.0, %v978
        %v980 = vpop.f32.mrb[0].mxu0
        %981 = vmatprep.mubr.bf16.mxu0 0
        %982 = vmatmul.mubr.bf16.gmra.mrb[0].mxu0 %v903
        %v983 = vpop.f32.mrb[0].mxu0
        %v984 = vadd.f32 0.0, %v983
        %v985 = vpop.f32.mrb[0].mxu0
        %v986 = vpop.f32.mrb[0].mxu0
        %v987 = vadd.f32 0.0, %v986
        %v988 = vpop.f32.mrb[0].mxu0
        %989 = vmatprep.mubr.bf16.mxu0 0
        %990 = vmatmul.mubr.bf16.gmra.mrb[0].mxu0 %v906
        %v991 = vpop.f32.mrb[0].mxu0
        %v992 = vadd.f32 0.0, %v991
        %v993 = vpop.f32.mrb[0].mxu0
        %v994 = vpop.f32.mrb[0].mxu0
        %v995 = vadd.f32 0.0, %v994
        %v996 = vpop.f32.mrb[0].mxu0
        %997 = vmatprep.mubr.bf16.mxu0 0
        %998 = vmatmul.mubr.bf16.gmra.mrb[0].mxu0 %v909
        %v999 = vpop.f32.mrb[0].mxu0
        %v1000 = vadd.f32 0.0, %v999
        %v1001 = vpop.f32.mrb[0].mxu0
        %v1002 = vpop.f32.mrb[0].mxu0
        %v1003 = vadd.f32 0.0, %v1002
        %v1004 = vpop.f32.mrb[0].mxu0
        %1005 = vmatprep.mubr.bf16.mxu0 0
        %1006 = vmatmul.mubr.bf16.gmra.mrb[0].mxu0 %v912
        %v1007 = vpop.f32.mrb[0].mxu0
        %v1008 = vadd.f32 0.0, %v1007
        %v1009 = vpop.f32.mrb[0].mxu0
        %v1010 = vpop.f32.mrb[0].mxu0
        %v1011 = vadd.f32 0.0, %v1010
        %v1012 = vpop.f32.mrb[0].mxu0
        %1013 = vdwg.mxu0
        %v1014 = vadd.f32 %v836, %v952
        %v1015 = vadd.f32 %v837, %v955
        %v1016 = vadd.f32 %v838, %v960
        %v1017 = vadd.f32 %v839, %v963
        %v1018 = vadd.f32 %v840, %v968
        %v1019 = vadd.f32 %v841, %v971
        %v1020 = vadd.f32 %v842, %v976
        %v1021 = vadd.f32 %v843, %v979
        %v1022 = vadd.f32 %v844, %v984
        %v1023 = vadd.f32 %v845, %v987
        %v1024 = vadd.f32 %v846, %v992
        %v1025 = vadd.f32 %v847, %v995
        %v1026 = vadd.f32 %v848, %v1000
        %v1027 = vadd.f32 %v849, %v1003
        %v1028 = vadd.f32 %v850, %v1008
        %v1029 = vadd.f32 %v851, %v1011
        %1030 = vst [vmem:[#allocation3] sm:$0xff] %v1014
        %1031 = vst [vmem:[#allocation3 + $0x8] sm:$0xff] %v1015
        %1032 = vst [vmem:[#allocation3 + $0x10] sm:$0xff] %v1016
        %1033 = vst [vmem:[#allocation3 + $0x18] sm:$0xff] %v1017
        %1034 = vst [vmem:[#allocation3 + $0x20] sm:$0xff] %v1018
        %1035 = vst [vmem:[#allocation3 + $0x28] sm:$0xff] %v1019
        %1036 = vst [vmem:[#allocation3 + $0x30] sm:$0xff] %v1020
        %1037 = vst [vmem:[#allocation3 + $0x38] sm:$0xff] %v1021
        %1038 = vst [vmem:[#allocation3 + $0x40] sm:$0xff] %v1022
        %1039 = vst [vmem:[#allocation3 + $0x48] sm:$0xff] %v1023
        %1040 = vst [vmem:[#allocation3 + $0x50] sm:$0xff] %v1024
        %1041 = vst [vmem:[#allocation3 + $0x58] sm:$0xff] %v1025
        %1042 = vst [vmem:[#allocation3 + $0x60] sm:$0xff] %v1026
        %1043 = vst [vmem:[#allocation3 + $0x68] sm:$0xff] %v1027
        %1044 = vst [vmem:[#allocation3 + $0x70] sm:$0xff] %v1028
        %1045 = vst [vmem:[#allocation3 + $0x78] sm:$0xff] %v1029
        %v1046 = vld [vmem:[#allocation3] sm:$0xff]
        %v1047 = vld [vmem:[#allocation3 + $0x8] sm:$0xff]
        %v1048 = vld [vmem:[#allocation3 + $0x10] sm:$0xff]
        %v1049 = vld [vmem:[#allocation3 + $0x18] sm:$0xff]
        %v1050 = vld [vmem:[#allocation3 + $0x20] sm:$0xff]
        %v1051 = vld [vmem:[#allocation3 + $0x28] sm:$0xff]
        %v1052 = vld [vmem:[#allocation3 + $0x30] sm:$0xff]
        %v1053 = vld [vmem:[#allocation3 + $0x38] sm:$0xff]
        %v1054 = vld [vmem:[#allocation3 + $0x40] sm:$0xff]
        %v1055 = vld [vmem:[#allocation3 + $0x48] sm:$0xff]
        %v1056 = vld [vmem:[#allocation3 + $0x50] sm:$0xff]
        %v1057 = vld [vmem:[#allocation3 + $0x58] sm:$0xff]
        %v1058 = vld [vmem:[#allocation3 + $0x60] sm:$0xff]
        %v1059 = vld [vmem:[#allocation3 + $0x68] sm:$0xff]
        %v1060 = vld [vmem:[#allocation3 + $0x70] sm:$0xff]
        %v1061 = vld [vmem:[#allocation3 + $0x78] sm:$0xff]
        %v1062 = vld [vmem:[#allocation2 + $0x8] sm:$0xfe]
        %v1063 = vld [vmem:[#allocation2 + $0x10] sm:$0xff]
        %v1064 = vld [vmem:[#allocation2 + $0x18] sm:$0xff]
        %v1065 = vld [vmem:[#allocation2 + $0x20] sm:$0xff]
        %v1066 = vld [vmem:[#allocation2 + $0x28] sm:$0xff]
        %v1067 = vld [vmem:[#allocation2 + $0x30] sm:$0xff]
        %v1068 = vld [vmem:[#allocation2 + $0x38] sm:$0xff]
        %v1069 = vld [vmem:[#allocation2 + $0x40] sm:$0xff]
        %v1070 = vld [vmem:[#allocation2 + $0x48] sm:$0x1]
        %s1071 = scalar_lea.vmem %s2, 6
        %v1072 = vld [vmem:[%s1071] sm:$0x3]
        %v1082 = vrot.slane %v1062, 1
        %v1083 = vrot.slane %v1063, 1
        %v1084 = vsel %vm872, %v1082, %v1083
        %v1085 = vrot.slane %v1064, 1
        %v1086 = vsel %vm872, %v1083, %v1085
        %v1087 = vrot.slane %v1065, 1
        %v1088 = vsel %vm872, %v1085, %v1087
        %v1089 = vrot.slane %v1066, 1
        %v1090 = vsel %vm872, %v1087, %v1089
        %v1091 = vrot.slane %v1067, 1
        %v1092 = vsel %vm872, %v1089, %v1091
        %v1093 = vrot.slane %v1068, 1
        %v1094 = vsel %vm872, %v1091, %v1093
        %v1095 = vrot.slane %v1069, 1
        %v1096 = vsel %vm872, %v1093, %v1095
        %v1097 = vrot.slane %v1070, 1
        %v1098 = vsel %vm872, %v1095, %v1097
        %v1100 = vsel %vm353, %v1084, 0
        %v1103 = vsel %vm353, %v1086, 0
        %v1106 = vsel %vm353, %v1088, 0
        %v1109 = vsel %vm353, %v1090, 0
        %v1112 = vsel %vm353, %v1092, 0
        %v1115 = vsel %vm353, %v1094, 0
        %v1118 = vsel %vm353, %v1096, 0
        %v1121 = vsel %vm353, %v1098, 0
        %v1124 = vsel %vm467, %v1072, 0
        %1126 = vmatprep.subr.bf16.mxu0 0
        %1127 = vmatpush1.bf16.msra.mxu0 %v1124
        %1128 = vmatprep.subr.bf16.mxu0 0
        %1129 = vmatpush1.bf16.msra.mxu0 0
        %1130 = vmatprep.subr.bf16.mxu0 0
        %1131 = vmatpush1.bf16.msra.mxu0 0
        %1132 = vmatprep.subr.bf16.mxu0 0
        %1133 = vmatpush1.bf16.msra.mxu0 0
        %1134 = vmatprep.subr.bf16.mxu0 0
        %1135 = vmatpush1.bf16.msra.mxu0 0
        %1136 = vmatprep.subr.bf16.mxu0 0
        %1137 = vmatpush1.bf16.msra.mxu0 0
        %1138 = vmatprep.subr.bf16.mxu0 0
        %1139 = vmatpush1.bf16.msra.mxu0 0
        %1140 = vmatprep.subr.bf16.mxu0 0
        %1141 = vmatpush1.bf16.msra.mxu0 0
        %1142 = vmatprep.subr.bf16.mxu0 0
        %1143 = vmatpush1.bf16.msra.mxu0 0
        %1144 = vmatprep.subr.bf16.mxu0 0
        %1145 = vmatpush1.bf16.msra.mxu0 0
        %1146 = vmatprep.subr.bf16.mxu0 0
        %1147 = vmatpush1.bf16.msra.mxu0 0
        %1148 = vmatprep.subr.bf16.mxu0 0
        %1149 = vmatpush1.bf16.msra.mxu0 0
        %1150 = vmatprep.subr.bf16.mxu0 0
        %1151 = vmatpush1.bf16.msra.mxu0 0
        %1152 = vmatprep.subr.bf16.mxu0 0
        %1153 = vmatpush1.bf16.msra.mxu0 0
        %1154 = vmatprep.subr.bf16.mxu0 0
        %1155 = vmatpush1.bf16.msra.mxu0 0
        %1156 = vmatprep.subr.bf16.mxu0 0
        %1157 = vmatpush1.bf16.msra.mxu0 0
        %1158 = vmatprep.mubr.bf16.mxu0 0
        %1159 = vmatmul.mubr.bf16.gmra.mrb[0].mxu0 %v1100
        %v1160 = vpop.f32.mrb[0].mxu0
        %v1161 = vadd.f32 0.0, %v1160
        %v1162 = vpop.f32.mrb[0].mxu0
        %v1163 = vpop.f32.mrb[0].mxu0
        %v1164 = vadd.f32 0.0, %v1163
        %v1165 = vpop.f32.mrb[0].mxu0
        %1166 = vmatprep.mubr.bf16.mxu0 0
        %1167 = vmatmul.mubr.bf16.gmra.mrb[0].mxu0 %v1103
        %v1168 = vpop.f32.mrb[0].mxu0
        %v1169 = vadd.f32 0.0, %v1168
        %v1170 = vpop.f32.mrb[0].mxu0
        %v1171 = vpop.f32.mrb[0].mxu0
        %v1172 = vadd.f32 0.0, %v1171
        %v1173 = vpop.f32.mrb[0].mxu0
        %1174 = vmatprep.mubr.bf16.mxu0 0
        %1175 = vmatmul.mubr.bf16.gmra.mrb[0].mxu0 %v1106
        %v1176 = vpop.f32.mrb[0].mxu0
        %v1177 = vadd.f32 0.0, %v1176
        %v1178 = vpop.f32.mrb[0].mxu0
        %v1179 = vpop.f32.mrb[0].mxu0
        %v1180 = vadd.f32 0.0, %v1179
        %v1181 = vpop.f32.mrb[0].mxu0
        %1182 = vmatprep.mubr.bf16.mxu0 0
        %1183 = vmatmul.mubr.bf16.gmra.mrb[0].mxu0 %v1109
        %v1184 = vpop.f32.mrb[0].mxu0
        %v1185 = vadd.f32 0.0, %v1184
        %v1186 = vpop.f32.mrb[0].mxu0
        %v1187 = vpop.f32.mrb[0].mxu0
        %v1188 = vadd.f32 0.0, %v1187
        %v1189 = vpop.f32.mrb[0].mxu0
        %1190 = vmatprep.mubr.bf16.mxu0 0
        %1191 = vmatmul.mubr.bf16.gmra.mrb[0].mxu0 %v1112
        %v1192 = vpop.f32.mrb[0].mxu0
        %v1193 = vadd.f32 0.0, %v1192
        %v1194 = vpop.f32.mrb[0].mxu0
        %v1195 = vpop.f32.mrb[0].mxu0
        %v1196 = vadd.f32 0.0, %v1195
        %v1197 = vpop.f32.mrb[0].mxu0
        %1198 = vmatprep.mubr.bf16.mxu0 0
        %1199 = vmatmul.mubr.bf16.gmra.mrb[0].mxu0 %v1115
        %v1200 = vpop.f32.mrb[0].mxu0
        %v1201 = vadd.f32 0.0, %v1200
        %v1202 = vpop.f32.mrb[0].mxu0
        %v1203 = vpop.f32.mrb[0].mxu0
        %v1204 = vadd.f32 0.0, %v1203
        %v1205 = vpop.f32.mrb[0].mxu0
        %1206 = vmatprep.mubr.bf16.mxu0 0
        %1207 = vmatmul.mubr.bf16.gmra.mrb[0].mxu0 %v1118
        %v1208 = vpop.f32.mrb[0].mxu0
        %v1209 = vadd.f32 0.0, %v1208
        %v1210 = vpop.f32.mrb[0].mxu0
        %v1211 = vpop.f32.mrb[0].mxu0
        %v1212 = vadd.f32 0.0, %v1211
        %v1213 = vpop.f32.mrb[0].mxu0
        %1214 = vmatprep.mubr.bf16.mxu0 0
        %1215 = vmatmul.mubr.bf16.gmra.mrb[0].mxu0 %v1121
        %v1216 = vpop.f32.mrb[0].mxu0
        %v1217 = vadd.f32 0.0, %v1216
        %v1218 = vpop.f32.mrb[0].mxu0
        %v1219 = vpop.f32.mrb[0].mxu0
        %v1220 = vadd.f32 0.0, %v1219
        %v1221 = vpop.f32.mrb[0].mxu0
        %1222 = vdwg.mxu0
        %v1223 = vadd.f32 %v1046, %v1161
        %v1224 = vadd.f32 %v1047, %v1164
        %v1225 = vadd.f32 %v1048, %v1169
        %v1226 = vadd.f32 %v1049, %v1172
        %v1227 = vadd.f32 %v1050, %v1177
        %v1228 = vadd.f32 %v1051, %v1180
        %v1229 = vadd.f32 %v1052, %v1185
        %v1230 = vadd.f32 %v1053, %v1188
        %v1231 = vadd.f32 %v1054, %v1193
        %v1232 = vadd.f32 %v1055, %v1196
        %v1233 = vadd.f32 %v1056, %v1201
        %v1234 = vadd.f32 %v1057, %v1204
        %v1235 = vadd.f32 %v1058, %v1209
        %v1236 = vadd.f32 %v1059, %v1212
        %v1237 = vadd.f32 %v1060, %v1217
        %v1238 = vadd.f32 %v1061, %v1220
        %1239 = vst [vmem:[#allocation3] sm:$0xff] %v1223
        %1240 = vst [vmem:[#allocation3 + $0x8] sm:$0xff] %v1224
        %1241 = vst [vmem:[#allocation3 + $0x10] sm:$0xff] %v1225
        %1242 = vst [vmem:[#allocation3 + $0x18] sm:$0xff] %v1226
        %1243 = vst [vmem:[#allocation3 + $0x20] sm:$0xff] %v1227
        %1244 = vst [vmem:[#allocation3 + $0x28] sm:$0xff] %v1228
        %1245 = vst [vmem:[#allocation3 + $0x30] sm:$0xff] %v1229
        %1246 = vst [vmem:[#allocation3 + $0x38] sm:$0xff] %v1230
        %1247 = vst [vmem:[#allocation3 + $0x40] sm:$0xff] %v1231
        %1248 = vst [vmem:[#allocation3 + $0x48] sm:$0xff] %v1232
        %1249 = vst [vmem:[#allocation3 + $0x50] sm:$0xff] %v1233
        %1250 = vst [vmem:[#allocation3 + $0x58] sm:$0xff] %v1234
        %1251 = vst [vmem:[#allocation3 + $0x60] sm:$0xff] %v1235
        %1252 = vst [vmem:[#allocation3 + $0x68] sm:$0xff] %v1236
        %1253 = vst [vmem:[#allocation3 + $0x70] sm:$0xff] %v1237
        %1254 = vst [vmem:[#allocation3 + $0x78] sm:$0xff] %v1238
        %v1255 = vld [vmem:[#allocation3] sm:$0xff]
        %v1256 = vld [vmem:[#allocation3 + $0x8] sm:$0xff]
        %v1257 = vld [vmem:[#allocation3 + $0x10] sm:$0xff]
        %v1258 = vld [vmem:[#allocation3 + $0x18] sm:$0xff]
        %v1259 = vld [vmem:[#allocation3 + $0x20] sm:$0xff]
        %v1260 = vld [vmem:[#allocation3 + $0x28] sm:$0xff]
        %v1261 = vld [vmem:[#allocation3 + $0x30] sm:$0xff]
        %v1262 = vld [vmem:[#allocation3 + $0x38] sm:$0xff]
        %v1263 = vld [vmem:[#allocation3 + $0x40] sm:$0xff]
        %v1264 = vld [vmem:[#allocation3 + $0x48] sm:$0xff]
        %v1265 = vld [vmem:[#allocation3 + $0x50] sm:$0xff]
        %v1266 = vld [vmem:[#allocation3 + $0x58] sm:$0xff]
        %v1267 = vld [vmem:[#allocation3 + $0x60] sm:$0xff]
        %v1268 = vld [vmem:[#allocation3 + $0x68] sm:$0xff]
        %v1269 = vld [vmem:[#allocation3 + $0x70] sm:$0xff]
        %v1270 = vld [vmem:[#allocation3 + $0x78] sm:$0xff]
        %v1271 = vld [vmem:[#allocation2 + $0x8] sm:$0xfe]
        %v1272 = vld [vmem:[#allocation2 + $0x10] sm:$0xff]
        %v1273 = vld [vmem:[#allocation2 + $0x18] sm:$0xff]
        %v1274 = vld [vmem:[#allocation2 + $0x20] sm:$0xff]
        %v1275 = vld [vmem:[#allocation2 + $0x28] sm:$0xff]
        %v1276 = vld [vmem:[#allocation2 + $0x30] sm:$0xff]
        %v1277 = vld [vmem:[#allocation2 + $0x38] sm:$0xff]
        %v1278 = vld [vmem:[#allocation2 + $0x40] sm:$0xff]
        %v1279 = vld [vmem:[#allocation2 + $0x48] sm:$0x3]
        %s1280 = scalar_lea.vmem %s2, 8
        %v1281 = vld [vmem:[%s1280] sm:$0x3]
        %vm1282 = vsmask.f32 6400
        %v1284 = vshrl.u32 %v1271, 16
        %v1286 = vrot.slane %v1284, 1
        %v1287 = vshll.u32 %v1271, 16
        %v1289 = vrot.slane %v1287, 2
        %v1290 = vor.u32 %v1286, %v1289
        %v1292 = vshrl.u32 %v1272, 16
        %v1294 = vrot.slane %v1292, 1
        %v1295 = vshll.u32 %v1272, 16
        %v1297 = vrot.slane %v1295, 2
        %v1298 = vor.u32 %v1294, %v1297
        %v1299 = vsel %vm1282, %v1290, %v1298
        %v1301 = vshrl.u32 %v1273, 16
        %v1303 = vrot.slane %v1301, 1
        %v1304 = vshll.u32 %v1273, 16
        %v1306 = vrot.slane %v1304, 2
        %v1307 = vor.u32 %v1303, %v1306
        %v1308 = vsel %vm1282, %v1298, %v1307
        %v1310 = vshrl.u32 %v1274, 16
        %v1312 = vrot.slane %v1310, 1
        %v1313 = vshll.u32 %v1274, 16
        %v1315 = vrot.slane %v1313, 2
        %v1316 = vor.u32 %v1312, %v1315
        %v1317 = vsel %vm1282, %v1307, %v1316
        %v1319 = vshrl.u32 %v1275, 16
        %v1321 = vrot.slane %v1319, 1
        %v1322 = vshll.u32 %v1275, 16
        %v1324 = vrot.slane %v1322, 2
        %v1325 = vor.u32 %v1321, %v1324
        %v1326 = vsel %vm1282, %v1316, %v1325
        %v1328 = vshrl.u32 %v1276, 16
        %v1330 = vrot.slane %v1328, 1
        %v1331 = vshll.u32 %v1276, 16
        %v1333 = vrot.slane %v1331, 2
        %v1334 = vor.u32 %v1330, %v1333
        %v1335 = vsel %vm1282, %v1325, %v1334
        %v1337 = vshrl.u32 %v1277, 16
        %v1339 = vrot.slane %v1337, 1
        %v1340 = vshll.u32 %v1277, 16
        %v1342 = vrot.slane %v1340, 2
        %v1343 = vor.u32 %v1339, %v1342
        %v1344 = vsel %vm1282, %v1334, %v1343
        %v1346 = vshrl.u32 %v1278, 16
        %v1348 = vrot.slane %v1346, 1
        %v1349 = vshll.u32 %v1278, 16
        %v1351 = vrot.slane %v1349, 2
        %v1352 = vor.u32 %v1348, %v1351
        %v1353 = vsel %vm1282, %v1343, %v1352
        %v1355 = vshrl.u32 %v1279, 16
        %v1357 = vrot.slane %v1355, 1
        %v1358 = vshll.u32 %v1279, 16
        %v1360 = vrot.slane %v1358, 2
        %v1361 = vor.u32 %v1357, %v1360
        %v1362 = vsel %vm1282, %v1352, %v1361
        %v1364 = vsel %vm353, %v1299, 0
        %v1367 = vsel %vm353, %v1308, 0
        %v1370 = vsel %vm353, %v1317, 0
        %v1373 = vsel %vm353, %v1326, 0
        %v1376 = vsel %vm353, %v1335, 0
        %v1379 = vsel %vm353, %v1344, 0
        %v1382 = vsel %vm353, %v1353, 0
        %v1385 = vsel %vm353, %v1362, 0
        %v1388 = vsel %vm467, %v1281, 0
        %1390 = vmatprep.subr.bf16.mxu0 0
        %1391 = vmatpush1.bf16.msra.mxu0 %v1388
        %1392 = vmatprep.subr.bf16.mxu0 0
        %1393 = vmatpush1.bf16.msra.mxu0 0
        %1394 = vmatprep.subr.bf16.mxu0 0
        %1395 = vmatpush1.bf16.msra.mxu0 0
        %1396 = vmatprep.subr.bf16.mxu0 0
        %1397 = vmatpush1.bf16.msra.mxu0 0
        %1398 = vmatprep.subr.bf16.mxu0 0
        %1399 = vmatpush1.bf16.msra.mxu0 0
        %1400 = vmatprep.subr.bf16.mxu0 0
        %1401 = vmatpush1.bf16.msra.mxu0 0
        %1402 = vmatprep.subr.bf16.mxu0 0
        %1403 = vmatpush1.bf16.msra.mxu0 0
        %1404 = vmatprep.subr.bf16.mxu0 0
        %1405 = vmatpush1.bf16.msra.mxu0 0
        %1406 = vmatprep.subr.bf16.mxu0 0
        %1407 = vmatpush1.bf16.msra.mxu0 0
        %1408 = vmatprep.subr.bf16.mxu0 0
        %1409 = vmatpush1.bf16.msra.mxu0 0
        %1410 = vmatprep.subr.bf16.mxu0 0
        %1411 = vmatpush1.bf16.msra.mxu0 0
        %1412 = vmatprep.subr.bf16.mxu0 0
        %1413 = vmatpush1.bf16.msra.mxu0 0
        %1414 = vmatprep.subr.bf16.mxu0 0
        %1415 = vmatpush1.bf16.msra.mxu0 0
        %1416 = vmatprep.subr.bf16.mxu0 0
        %1417 = vmatpush1.bf16.msra.mxu0 0
        %1418 = vmatprep.subr.bf16.mxu0 0
        %1419 = vmatpush1.bf16.msra.mxu0 0
        %1420 = vmatprep.subr.bf16.mxu0 0
        %1421 = vmatpush1.bf16.msra.mxu0 0
        %1422 = vmatprep.mubr.bf16.mxu0 0
        %1423 = vmatmul.mubr.bf16.gmra.mrb[0].mxu0 %v1364
        %v1424 = vpop.f32.mrb[0].mxu0
        %v1425 = vadd.f32 0.0, %v1424
        %v1426 = vpop.f32.mrb[0].mxu0
        %v1427 = vpop.f32.mrb[0].mxu0
        %v1428 = vadd.f32 0.0, %v1427
        %v1429 = vpop.f32.mrb[0].mxu0
        %1430 = vmatprep.mubr.bf16.mxu0 0
        %1431 = vmatmul.mubr.bf16.gmra.mrb[0].mxu0 %v1367
        %v1432 = vpop.f32.mrb[0].mxu0
        %v1433 = vadd.f32 0.0, %v1432
        %v1434 = vpop.f32.mrb[0].mxu0
        %v1435 = vpop.f32.mrb[0].mxu0
        %v1436 = vadd.f32 0.0, %v1435
        %v1437 = vpop.f32.mrb[0].mxu0
        %1438 = vmatprep.mubr.bf16.mxu0 0
        %1439 = vmatmul.mubr.bf16.gmra.mrb[0].mxu0 %v1370
        %v1440 = vpop.f32.mrb[0].mxu0
        %v1441 = vadd.f32 0.0, %v1440
        %v1442 = vpop.f32.mrb[0].mxu0
        %v1443 = vpop.f32.mrb[0].mxu0
        %v1444 = vadd.f32 0.0, %v1443
        %v1445 = vpop.f32.mrb[0].mxu0
        %1446 = vmatprep.mubr.bf16.mxu0 0
        %1447 = vmatmul.mubr.bf16.gmra.mrb[0].mxu0 %v1373
        %v1448 = vpop.f32.mrb[0].mxu0
        %v1449 = vadd.f32 0.0, %v1448
        %v1450 = vpop.f32.mrb[0].mxu0
        %v1451 = vpop.f32.mrb[0].mxu0
        %v1452 = vadd.f32 0.0, %v1451
        %v1453 = vpop.f32.mrb[0].mxu0
        %1454 = vmatprep.mubr.bf16.mxu0 0
        %1455 = vmatmul.mubr.bf16.gmra.mrb[0].mxu0 %v1376
        %v1456 = vpop.f32.mrb[0].mxu0
        %v1457 = vadd.f32 0.0, %v1456
        %v1458 = vpop.f32.mrb[0].mxu0
        %v1459 = vpop.f32.mrb[0].mxu0
        %v1460 = vadd.f32 0.0, %v1459
        %v1461 = vpop.f32.mrb[0].mxu0
        %1462 = vmatprep.mubr.bf16.mxu0 0
        %1463 = vmatmul.mubr.bf16.gmra.mrb[0].mxu0 %v1379
        %v1464 = vpop.f32.mrb[0].mxu0
        %v1465 = vadd.f32 0.0, %v1464
        %v1466 = vpop.f32.mrb[0].mxu0
        %v1467 = vpop.f32.mrb[0].mxu0
        %v1468 = vadd.f32 0.0, %v1467
        %v1469 = vpop.f32.mrb[0].mxu0
        %1470 = vmatprep.mubr.bf16.mxu0 0
        %1471 = vmatmul.mubr.bf16.gmra.mrb[0].mxu0 %v1382
        %v1472 = vpop.f32.mrb[0].mxu0
        %v1473 = vadd.f32 0.0, %v1472
        %v1474 = vpop.f32.mrb[0].mxu0
        %v1475 = vpop.f32.mrb[0].mxu0
        %v1476 = vadd.f32 0.0, %v1475
        %v1477 = vpop.f32.mrb[0].mxu0
        %1478 = vmatprep.mubr.bf16.mxu0 0
        %1479 = vmatmul.mubr.bf16.gmra.mrb[0].mxu0 %v1385
        %v1480 = vpop.f32.mrb[0].mxu0
        %v1481 = vadd.f32 0.0, %v1480
        %v1482 = vpop.f32.mrb[0].mxu0
        %v1483 = vpop.f32.mrb[0].mxu0
        %v1484 = vadd.f32 0.0, %v1483
        %v1485 = vpop.f32.mrb[0].mxu0
        %1486 = vdwg.mxu0
        %v1487 = vadd.f32 %v1255, %v1425
        %v1488 = vadd.f32 %v1256, %v1428
        %v1489 = vadd.f32 %v1257, %v1433
        %v1490 = vadd.f32 %v1258, %v1436
        %v1491 = vadd.f32 %v1259, %v1441
        %v1492 = vadd.f32 %v1260, %v1444
        %v1493 = vadd.f32 %v1261, %v1449
        %v1494 = vadd.f32 %v1262, %v1452
        %v1495 = vadd.f32 %v1263, %v1457
        %v1496 = vadd.f32 %v1264, %v1460
        %v1497 = vadd.f32 %v1265, %v1465
        %v1498 = vadd.f32 %v1266, %v1468
        %v1499 = vadd.f32 %v1267, %v1473
        %v1500 = vadd.f32 %v1268, %v1476
        %v1501 = vadd.f32 %v1269, %v1481
        %v1502 = vadd.f32 %v1270, %v1484
        %1503 = vst [vmem:[#allocation3] sm:$0xff] %v1487
        %1504 = vst [vmem:[#allocation3 + $0x8] sm:$0xff] %v1488
        %1505 = vst [vmem:[#allocation3 + $0x10] sm:$0xff] %v1489
        %1506 = vst [vmem:[#allocation3 + $0x18] sm:$0xff] %v1490
        %1507 = vst [vmem:[#allocation3 + $0x20] sm:$0xff] %v1491
        %1508 = vst [vmem:[#allocation3 + $0x28] sm:$0xff] %v1492
        %1509 = vst [vmem:[#allocation3 + $0x30] sm:$0xff] %v1493
        %1510 = vst [vmem:[#allocation3 + $0x38] sm:$0xff] %v1494
        %1511 = vst [vmem:[#allocation3 + $0x40] sm:$0xff] %v1495
        %1512 = vst [vmem:[#allocation3 + $0x48] sm:$0xff] %v1496
        %1513 = vst [vmem:[#allocation3 + $0x50] sm:$0xff] %v1497
        %1514 = vst [vmem:[#allocation3 + $0x58] sm:$0xff] %v1498
        %1515 = vst [vmem:[#allocation3 + $0x60] sm:$0xff] %v1499
        %1516 = vst [vmem:[#allocation3 + $0x68] sm:$0xff] %v1500
        %1517 = vst [vmem:[#allocation3 + $0x70] sm:$0xff] %v1501
        %1518 = vst [vmem:[#allocation3 + $0x78] sm:$0xff] %v1502
        %v1519 = vld [vmem:[#allocation3] sm:$0xff]
        %v1520 = vld [vmem:[#allocation3 + $0x8] sm:$0xff]
        %v1521 = vld [vmem:[#allocation3 + $0x10] sm:$0xff]
        %v1522 = vld [vmem:[#allocation3 + $0x18] sm:$0xff]
        %v1523 = vld [vmem:[#allocation3 + $0x20] sm:$0xff]
        %v1524 = vld [vmem:[#allocation3 + $0x28] sm:$0xff]
        %v1525 = vld [vmem:[#allocation3 + $0x30] sm:$0xff]
        %v1526 = vld [vmem:[#allocation3 + $0x38] sm:$0xff]
        %v1527 = vld [vmem:[#allocation3 + $0x40] sm:$0xff]
        %v1528 = vld [vmem:[#allocation3 + $0x48] sm:$0xff]
        %v1529 = vld [vmem:[#allocation3 + $0x50] sm:$0xff]
        %v1530 = vld [vmem:[#allocation3 + $0x58] sm:$0xff]
        %v1531 = vld [vmem:[#allocation3 + $0x60] sm:$0xff]
        %v1532 = vld [vmem:[#allocation3 + $0x68] sm:$0xff]
        %v1533 = vld [vmem:[#allocation3 + $0x70] sm:$0xff]
        %v1534 = vld [vmem:[#allocation3 + $0x78] sm:$0xff]
        %v1535 = vld [vmem:[#allocation2 + $0x8] sm:$0xfc]
        %v1536 = vld [vmem:[#allocation2 + $0x10] sm:$0xff]
        %v1537 = vld [vmem:[#allocation2 + $0x18] sm:$0xff]
        %v1538 = vld [vmem:[#allocation2 + $0x20] sm:$0xff]
        %v1539 = vld [vmem:[#allocation2 + $0x28] sm:$0xff]
        %v1540 = vld [vmem:[#allocation2 + $0x30] sm:$0xff]
        %v1541 = vld [vmem:[#allocation2 + $0x38] sm:$0xff]
        %v1542 = vld [vmem:[#allocation2 + $0x40] sm:$0xff]
        %v1543 = vld [vmem:[#allocation2 + $0x48] sm:$0x3]
        %s1544 = scalar_lea.vmem %s2, 10
        %v1545 = vld [vmem:[%s1544] sm:$0x3]
        %vm1555 = vcmask 1045504
        %v1556 = vrot.slane %v1535, 2
        %v1557 = vrot.slane %v1536, 2
        %v1558 = vsel %vm1555, %v1556, %v1557
        %v1559 = vrot.slane %v1537, 2
        %v1560 = vsel %vm1555, %v1557, %v1559
        %v1561 = vrot.slane %v1538, 2
        %v1562 = vsel %vm1555, %v1559, %v1561
        %v1563 = vrot.slane %v1539, 2
        %v1564 = vsel %vm1555, %v1561, %v1563
        %v1565 = vrot.slane %v1540, 2
        %v1566 = vsel %vm1555, %v1563, %v1565
        %v1567 = vrot.slane %v1541, 2
        %v1568 = vsel %vm1555, %v1565, %v1567
        %v1569 = vrot.slane %v1542, 2
        %v1570 = vsel %vm1555, %v1567, %v1569
        %v1571 = vrot.slane %v1543, 2
        %v1572 = vsel %vm1555, %v1569, %v1571
        %v1574 = vsel %vm353, %v1558, 0
        %v1577 = vsel %vm353, %v1560, 0
        %v1580 = vsel %vm353, %v1562, 0
        %v1583 = vsel %vm353, %v1564, 0
        %v1586 = vsel %vm353, %v1566, 0
        %v1589 = vsel %vm353, %v1568, 0
        %v1592 = vsel %vm353, %v1570, 0
        %v1595 = vsel %vm353, %v1572, 0
        %v1598 = vsel %vm467, %v1545, 0
        %1600 = vmatprep.subr.bf16.mxu0 0
        %1601 = vmatpush1.bf16.msra.mxu0 %v1598
        %1602 = vmatprep.subr.bf16.mxu0 0
        %1603 = vmatpush1.bf16.msra.mxu0 0
        %1604 = vmatprep.subr.bf16.mxu0 0
        %1605 = vmatpush1.bf16.msra.mxu0 0
        %1606 = vmatprep.subr.bf16.mxu0 0
        %1607 = vmatpush1.bf16.msra.mxu0 0
        %1608 = vmatprep.subr.bf16.mxu0 0
        %1609 = vmatpush1.bf16.msra.mxu0 0
        %1610 = vmatprep.subr.bf16.mxu0 0
        %1611 = vmatpush1.bf16.msra.mxu0 0
        %1612 = vmatprep.subr.bf16.mxu0 0
        %1613 = vmatpush1.bf16.msra.mxu0 0
        %1614 = vmatprep.subr.bf16.mxu0 0
        %1615 = vmatpush1.bf16.msra.mxu0 0
        %1616 = vmatprep.subr.bf16.mxu0 0
        %1617 = vmatpush1.bf16.msra.mxu0 0
        %1618 = vmatprep.subr.bf16.mxu0 0
        %1619 = vmatpush1.bf16.msra.mxu0 0
        %1620 = vmatprep.subr.bf16.mxu0 0
        %1621 = vmatpush1.bf16.msra.mxu0 0
        %1622 = vmatprep.subr.bf16.mxu0 0
        %1623 = vmatpush1.bf16.msra.mxu0 0
        %1624 = vmatprep.subr.bf16.mxu0 0
        %1625 = vmatpush1.bf16.msra.mxu0 0
        %1626 = vmatprep.subr.bf16.mxu0 0
        %1627 = vmatpush1.bf16.msra.mxu0 0
        %1628 = vmatprep.subr.bf16.mxu0 0
        %1629 = vmatpush1.bf16.msra.mxu0 0
        %1630 = vmatprep.subr.bf16.mxu0 0
        %1631 = vmatpush1.bf16.msra.mxu0 0
        %1632 = vmatprep.mubr.bf16.mxu0 0
        %1633 = vmatmul.mubr.bf16.gmra.mrb[0].mxu0 %v1574
        %v1634 = vpop.f32.mrb[0].mxu0
        %v1635 = vadd.f32 0.0, %v1634
        %v1636 = vpop.f32.mrb[0].mxu0
        %v1637 = vpop.f32.mrb[0].mxu0
        %v1638 = vadd.f32 0.0, %v1637
        %v1639 = vpop.f32.mrb[0].mxu0
        %1640 = vmatprep.mubr.bf16.mxu0 0
        %1641 = vmatmul.mubr.bf16.gmra.mrb[0].mxu0 %v1577
        %v1642 = vpop.f32.mrb[0].mxu0
        %v1643 = vadd.f32 0.0, %v1642
        %v1644 = vpop.f32.mrb[0].mxu0
        %v1645 = vpop.f32.mrb[0].mxu0
        %v1646 = vadd.f32 0.0, %v1645
        %v1647 = vpop.f32.mrb[0].mxu0
        %1648 = vmatprep.mubr.bf16.mxu0 0
        %1649 = vmatmul.mubr.bf16.gmra.mrb[0].mxu0 %v1580
        %v1650 = vpop.f32.mrb[0].mxu0
        %v1651 = vadd.f32 0.0, %v1650
        %v1652 = vpop.f32.mrb[0].mxu0
        %v1653 = vpop.f32.mrb[0].mxu0
        %v1654 = vadd.f32 0.0, %v1653
        %v1655 = vpop.f32.mrb[0].mxu0
        %1656 = vmatprep.mubr.bf16.mxu0 0
        %1657 = vmatmul.mubr.bf16.gmra.mrb[0].mxu0 %v1583
        %v1658 = vpop.f32.mrb[0].mxu0
        %v1659 = vadd.f32 0.0, %v1658
        %v1660 = vpop.f32.mrb[0].mxu0
        %v1661 = vpop.f32.mrb[0].mxu0
        %v1662 = vadd.f32 0.0, %v1661
        %v1663 = vpop.f32.mrb[0].mxu0
        %1664 = vmatprep.mubr.bf16.mxu0 0
        %1665 = vmatmul.mubr.bf16.gmra.mrb[0].mxu0 %v1586
        %v1666 = vpop.f32.mrb[0].mxu0
        %v1667 = vadd.f32 0.0, %v1666
        %v1668 = vpop.f32.mrb[0].mxu0
        %v1669 = vpop.f32.mrb[0].mxu0
        %v1670 = vadd.f32 0.0, %v1669
        %v1671 = vpop.f32.mrb[0].mxu0
        %1672 = vmatprep.mubr.bf16.mxu0 0
        %1673 = vmatmul.mubr.bf16.gmra.mrb[0].mxu0 %v1589
        %v1674 = vpop.f32.mrb[0].mxu0
        %v1675 = vadd.f32 0.0, %v1674
        %v1676 = vpop.f32.mrb[0].mxu0
        %v1677 = vpop.f32.mrb[0].mxu0
        %v1678 = vadd.f32 0.0, %v1677
        %v1679 = vpop.f32.mrb[0].mxu0
        %1680 = vmatprep.mubr.bf16.mxu0 0
        %1681 = vmatmul.mubr.bf16.gmra.mrb[0].mxu0 %v1592
        %v1682 = vpop.f32.mrb[0].mxu0
        %v1683 = vadd.f32 0.0, %v1682
        %v1684 = vpop.f32.mrb[0].mxu0
        %v1685 = vpop.f32.mrb[0].mxu0
        %v1686 = vadd.f32 0.0, %v1685
        %v1687 = vpop.f32.mrb[0].mxu0
        %1688 = vmatprep.mubr.bf16.mxu0 0
        %1689 = vmatmul.mubr.bf16.gmra.mrb[0].mxu0 %v1595
        %v1690 = vpop.f32.mrb[0].mxu0
        %v1691 = vadd.f32 0.0, %v1690
        %v1692 = vpop.f32.mrb[0].mxu0
        %v1693 = vpop.f32.mrb[0].mxu0
        %v1694 = vadd.f32 0.0, %v1693
        %v1695 = vpop.f32.mrb[0].mxu0
        %1696 = vdwg.mxu0
        %v1697 = vadd.f32 %v1519, %v1635
        %v1698 = vadd.f32 %v1520, %v1638
        %v1699 = vadd.f32 %v1521, %v1643
        %v1700 = vadd.f32 %v1522, %v1646
        %v1701 = vadd.f32 %v1523, %v1651
        %v1702 = vadd.f32 %v1524, %v1654
        %v1703 = vadd.f32 %v1525, %v1659
        %v1704 = vadd.f32 %v1526, %v1662
        %v1705 = vadd.f32 %v1527, %v1667
        %v1706 = vadd.f32 %v1528, %v1670
        %v1707 = vadd.f32 %v1529, %v1675
        %v1708 = vadd.f32 %v1530, %v1678
        %v1709 = vadd.f32 %v1531, %v1683
        %v1710 = vadd.f32 %v1532, %v1686
        %v1711 = vadd.f32 %v1533, %v1691
        %v1712 = vadd.f32 %v1534, %v1694
        %1713 = vst [vmem:[#allocation3] sm:$0xff] %v1697
        %1714 = vst [vmem:[#allocation3 + $0x8] sm:$0xff] %v1698
        %1715 = vst [vmem:[#allocation3 + $0x10] sm:$0xff] %v1699
        %1716 = vst [vmem:[#allocation3 + $0x18] sm:$0xff] %v1700
        %1717 = vst [vmem:[#allocation3 + $0x20] sm:$0xff] %v1701
        %1718 = vst [vmem:[#allocation3 + $0x28] sm:$0xff] %v1702
        %1719 = vst [vmem:[#allocation3 + $0x30] sm:$0xff] %v1703
        %1720 = vst [vmem:[#allocation3 + $0x38] sm:$0xff] %v1704
        %1721 = vst [vmem:[#allocation3 + $0x40] sm:$0xff] %v1705
        %1722 = vst [vmem:[#allocation3 + $0x48] sm:$0xff] %v1706
        %1723 = vst [vmem:[#allocation3 + $0x50] sm:$0xff] %v1707
        %1724 = vst [vmem:[#allocation3 + $0x58] sm:$0xff] %v1708
        %1725 = vst [vmem:[#allocation3 + $0x60] sm:$0xff] %v1709
        %1726 = vst [vmem:[#allocation3 + $0x68] sm:$0xff] %v1710
        %1727 = vst [vmem:[#allocation3 + $0x70] sm:$0xff] %v1711
        %1728 = vst [vmem:[#allocation3 + $0x78] sm:$0xff] %v1712
        %v1729 = vld [vmem:[#allocation3] sm:$0xff]
        %v1730 = vld [vmem:[#allocation3 + $0x8] sm:$0xff]
        %v1731 = vld [vmem:[#allocation3 + $0x10] sm:$0xff]
        %v1732 = vld [vmem:[#allocation3 + $0x18] sm:$0xff]
        %v1733 = vld [vmem:[#allocation3 + $0x20] sm:$0xff]
        %v1734 = vld [vmem:[#allocation3 + $0x28] sm:$0xff]
        %v1735 = vld [vmem:[#allocation3 + $0x30] sm:$0xff]
        %v1736 = vld [vmem:[#allocation3 + $0x38] sm:$0xff]
        %v1737 = vld [vmem:[#allocation3 + $0x40] sm:$0xff]
        %v1738 = vld [vmem:[#allocation3 + $0x48] sm:$0xff]
        %v1739 = vld [vmem:[#allocation3 + $0x50] sm:$0xff]
        %v1740 = vld [vmem:[#allocation3 + $0x58] sm:$0xff]
        %v1741 = vld [vmem:[#allocation3 + $0x60] sm:$0xff]
        %v1742 = vld [vmem:[#allocation3 + $0x68] sm:$0xff]
        %v1743 = vld [vmem:[#allocation3 + $0x70] sm:$0xff]
        %v1744 = vld [vmem:[#allocation3 + $0x78] sm:$0xff]
        %v1745 = vld [vmem:[#allocation2 + $0x10] sm:$0xfc]
        %v1746 = vld [vmem:[#allocation2 + $0x18] sm:$0xff]
        %v1747 = vld [vmem:[#allocation2 + $0x20] sm:$0xff]
        %v1748 = vld [vmem:[#allocation2 + $0x28] sm:$0xff]
        %v1749 = vld [vmem:[#allocation2 + $0x30] sm:$0xff]
        %v1750 = vld [vmem:[#allocation2 + $0x38] sm:$0xff]
        %v1751 = vld [vmem:[#allocation2 + $0x40] sm:$0xff]
        %v1752 = vld [vmem:[#allocation2 + $0x48] sm:$0xff]
        %v1753 = vld [vmem:[#allocation2 + $0x50] sm:$0x3]
        %s1754 = scalar_lea.vmem %s2, 12
        %v1755 = vld [vmem:[%s1754] sm:$0x3]
        %v1765 = vrot.slane %v1745, 2
        %v1766 = vrot.slane %v1746, 2
        %v1767 = vsel %vm1555, %v1765, %v1766
        %v1768 = vrot.slane %v1747, 2
        %v1769 = vsel %vm1555, %v1766, %v1768
        %v1770 = vrot.slane %v1748, 2
        %v1771 = vsel %vm1555, %v1768, %v1770
        %v1772 = vrot.slane %v1749, 2
        %v1773 = vsel %vm1555, %v1770, %v1772
        %v1774 = vrot.slane %v1750, 2
        %v1775 = vsel %vm1555, %v1772, %v1774
        %v1776 = vrot.slane %v1751, 2
        %v1777 = vsel %vm1555, %v1774, %v1776
        %v1778 = vrot.slane %v1752, 2
        %v1779 = vsel %vm1555, %v1776, %v1778
        %v1780 = vrot.slane %v1753, 2
        %v1781 = vsel %vm1555, %v1778, %v1780
        %v1783 = vsel %vm353, %v1767, 0
        %v1786 = vsel %vm353, %v1769, 0
        %v1789 = vsel %vm353, %v1771, 0
        %v1792 = vsel %vm353, %v1773, 0
        %v1795 = vsel %vm353, %v1775, 0
        %v1798 = vsel %vm353, %v1777, 0
        %v1801 = vsel %vm353, %v1779, 0
        %v1804 = vsel %vm353, %v1781, 0
        %v1807 = vsel %vm467, %v1755, 0
        %1809 = vmatprep.subr.bf16.mxu0 0
        %1810 = vmatpush1.bf16.msra.mxu0 %v1807
        %1811 = vmatprep.subr.bf16.mxu0 0
        %1812 = vmatpush1.bf16.msra.mxu0 0
        %1813 = vmatprep.subr.bf16.mxu0 0
        %1814 = vmatpush1.bf16.msra.mxu0 0
        %1815 = vmatprep.subr.bf16.mxu0 0
        %1816 = vmatpush1.bf16.msra.mxu0 0
        %1817 = vmatprep.subr.bf16.mxu0 0
        %1818 = vmatpush1.bf16.msra.mxu0 0
        %1819 = vmatprep.subr.bf16.mxu0 0
        %1820 = vmatpush1.bf16.msra.mxu0 0
        %1821 = vmatprep.subr.bf16.mxu0 0
        %1822 = vmatpush1.bf16.msra.mxu0 0
        %1823 = vmatprep.subr.bf16.mxu0 0
        %1824 = vmatpush1.bf16.msra.mxu0 0
        %1825 = vmatprep.subr.bf16.mxu0 0
        %1826 = vmatpush1.bf16.msra.mxu0 0
        %1827 = vmatprep.subr.bf16.mxu0 0
        %1828 = vmatpush1.bf16.msra.mxu0 0
        %1829 = vmatprep.subr.bf16.mxu0 0
        %1830 = vmatpush1.bf16.msra.mxu0 0
        %1831 = vmatprep.subr.bf16.mxu0 0
        %1832 = vmatpush1.bf16.msra.mxu0 0
        %1833 = vmatprep.subr.bf16.mxu0 0
        %1834 = vmatpush1.bf16.msra.mxu0 0
        %1835 = vmatprep.subr.bf16.mxu0 0
        %1836 = vmatpush1.bf16.msra.mxu0 0
        %1837 = vmatprep.subr.bf16.mxu0 0
        %1838 = vmatpush1.bf16.msra.mxu0 0
        %1839 = vmatprep.subr.bf16.mxu0 0
        %1840 = vmatpush1.bf16.msra.mxu0 0
        %1841 = vmatprep.mubr.bf16.mxu0 0
        %1842 = vmatmul.mubr.bf16.gmra.mrb[0].mxu0 %v1783
        %v1843 = vpop.f32.mrb[0].mxu0
        %v1844 = vadd.f32 0.0, %v1843
        %v1845 = vpop.f32.mrb[0].mxu0
        %v1846 = vpop.f32.mrb[0].mxu0
        %v1847 = vadd.f32 0.0, %v1846
        %v1848 = vpop.f32.mrb[0].mxu0
        %1849 = vmatprep.mubr.bf16.mxu0 0
        %1850 = vmatmul.mubr.bf16.gmra.mrb[0].mxu0 %v1786
        %v1851 = vpop.f32.mrb[0].mxu0
        %v1852 = vadd.f32 0.0, %v1851
        %v1853 = vpop.f32.mrb[0].mxu0
        %v1854 = vpop.f32.mrb[0].mxu0
        %v1855 = vadd.f32 0.0, %v1854
        %v1856 = vpop.f32.mrb[0].mxu0
        %1857 = vmatprep.mubr.bf16.mxu0 0
        %1858 = vmatmul.mubr.bf16.gmra.mrb[0].mxu0 %v1789
        %v1859 = vpop.f32.mrb[0].mxu0
        %v1860 = vadd.f32 0.0, %v1859
        %v1861 = vpop.f32.mrb[0].mxu0
        %v1862 = vpop.f32.mrb[0].mxu0
        %v1863 = vadd.f32 0.0, %v1862
        %v1864 = vpop.f32.mrb[0].mxu0
        %1865 = vmatprep.mubr.bf16.mxu0 0
        %1866 = vmatmul.mubr.bf16.gmra.mrb[0].mxu0 %v1792
        %v1867 = vpop.f32.mrb[0].mxu0
        %v1868 = vadd.f32 0.0, %v1867
        %v1869 = vpop.f32.mrb[0].mxu0
        %v1870 = vpop.f32.mrb[0].mxu0
        %v1871 = vadd.f32 0.0, %v1870
        %v1872 = vpop.f32.mrb[0].mxu0
        %1873 = vmatprep.mubr.bf16.mxu0 0
        %1874 = vmatmul.mubr.bf16.gmra.mrb[0].mxu0 %v1795
        %v1875 = vpop.f32.mrb[0].mxu0
        %v1876 = vadd.f32 0.0, %v1875
        %v1877 = vpop.f32.mrb[0].mxu0
        %v1878 = vpop.f32.mrb[0].mxu0
        %v1879 = vadd.f32 0.0, %v1878
        %v1880 = vpop.f32.mrb[0].mxu0
        %1881 = vmatprep.mubr.bf16.mxu0 0
        %1882 = vmatmul.mubr.bf16.gmra.mrb[0].mxu0 %v1798
        %v1883 = vpop.f32.mrb[0].mxu0
        %v1884 = vadd.f32 0.0, %v1883
        %v1885 = vpop.f32.mrb[0].mxu0
        %v1886 = vpop.f32.mrb[0].mxu0
        %v1887 = vadd.f32 0.0, %v1886
        %v1888 = vpop.f32.mrb[0].mxu0
        %1889 = vmatprep.mubr.bf16.mxu0 0
        %1890 = vmatmul.mubr.bf16.gmra.mrb[0].mxu0 %v1801
        %v1891 = vpop.f32.mrb[0].mxu0
        %v1892 = vadd.f32 0.0, %v1891
        %v1893 = vpop.f32.mrb[0].mxu0
        %v1894 = vpop.f32.mrb[0].mxu0
        %v1895 = vadd.f32 0.0, %v1894
        %v1896 = vpop.f32.mrb[0].mxu0
        %1897 = vmatprep.mubr.bf16.mxu0 0
        %1898 = vmatmul.mubr.bf16.gmra.mrb[0].mxu0 %v1804
        %v1899 = vpop.f32.mrb[0].mxu0
        %v1900 = vadd.f32 0.0, %v1899
        %v1901 = vpop.f32.mrb[0].mxu0
        %v1902 = vpop.f32.mrb[0].mxu0
        %v1903 = vadd.f32 0.0, %v1902
        %v1904 = vpop.f32.mrb[0].mxu0
        %1905 = vdwg.mxu0
        %v1906 = vadd.f32 %v1729, %v1844
        %v1907 = vadd.f32 %v1730, %v1847
        %v1908 = vadd.f32 %v1731, %v1852
        %v1909 = vadd.f32 %v1732, %v1855
        %v1910 = vadd.f32 %v1733, %v1860
        %v1911 = vadd.f32 %v1734, %v1863
        %v1912 = vadd.f32 %v1735, %v1868
        %v1913 = vadd.f32 %v1736, %v1871
        %v1914 = vadd.f32 %v1737, %v1876
        %v1915 = vadd.f32 %v1738, %v1879
        %v1916 = vadd.f32 %v1739, %v1884
        %v1917 = vadd.f32 %v1740, %v1887
        %v1918 = vadd.f32 %v1741, %v1892
        %v1919 = vadd.f32 %v1742, %v1895
        %v1920 = vadd.f32 %v1743, %v1900
        %v1921 = vadd.f32 %v1744, %v1903
        %1922 = vst [vmem:[#allocation3] sm:$0xff] %v1906
        %1923 = vst [vmem:[#allocation3 + $0x8] sm:$0xff] %v1907
        %1924 = vst [vmem:[#allocation3 + $0x10] sm:$0xff] %v1908
        %1925 = vst [vmem:[#allocation3 + $0x18] sm:$0xff] %v1909
        %1926 = vst [vmem:[#allocation3 + $0x20] sm:$0xff] %v1910
        %1927 = vst [vmem:[#allocation3 + $0x28] sm:$0xff] %v1911
        %1928 = vst [vmem:[#allocation3 + $0x30] sm:$0xff] %v1912
        %1929 = vst [vmem:[#allocation3 + $0x38] sm:$0xff] %v1913
        %1930 = vst [vmem:[#allocation3 + $0x40] sm:$0xff] %v1914
        %1931 = vst [vmem:[#allocation3 + $0x48] sm:$0xff] %v1915
        %1932 = vst [vmem:[#allocation3 + $0x50] sm:$0xff] %v1916
        %1933 = vst [vmem:[#allocation3 + $0x58] sm:$0xff] %v1917
        %1934 = vst [vmem:[#allocation3 + $0x60] sm:$0xff] %v1918
        %1935 = vst [vmem:[#allocation3 + $0x68] sm:$0xff] %v1919
        %1936 = vst [vmem:[#allocation3 + $0x70] sm:$0xff] %v1920
        %1937 = vst [vmem:[#allocation3 + $0x78] sm:$0xff] %v1921
        %v1938 = vld [vmem:[#allocation3] sm:$0xff]
        %v1939 = vld [vmem:[#allocation3 + $0x8] sm:$0xff]
        %v1940 = vld [vmem:[#allocation3 + $0x10] sm:$0xff]
        %v1941 = vld [vmem:[#allocation3 + $0x18] sm:$0xff]
        %v1942 = vld [vmem:[#allocation3 + $0x20] sm:$0xff]
        %v1943 = vld [vmem:[#allocation3 + $0x28] sm:$0xff]
        %v1944 = vld [vmem:[#allocation3 + $0x30] sm:$0xff]
        %v1945 = vld [vmem:[#allocation3 + $0x38] sm:$0xff]
        %v1946 = vld [vmem:[#allocation3 + $0x40] sm:$0xff]
        %v1947 = vld [vmem:[#allocation3 + $0x48] sm:$0xff]
        %v1948 = vld [vmem:[#allocation3 + $0x50] sm:$0xff]
        %v1949 = vld [vmem:[#allocation3 + $0x58] sm:$0xff]
        %v1950 = vld [vmem:[#allocation3 + $0x60] sm:$0xff]
        %v1951 = vld [vmem:[#allocation3 + $0x68] sm:$0xff]
        %v1952 = vld [vmem:[#allocation3 + $0x70] sm:$0xff]
        %v1953 = vld [vmem:[#allocation3 + $0x78] sm:$0xff]
        %v1954 = vld [vmem:[#allocation2 + $0x10] sm:$0xfc]
        %v1955 = vld [vmem:[#allocation2 + $0x18] sm:$0xff]
        %v1956 = vld [vmem:[#allocation2 + $0x20] sm:$0xff]
        %v1957 = vld [vmem:[#allocation2 + $0x28] sm:$0xff]
        %v1958 = vld [vmem:[#allocation2 + $0x30] sm:$0xff]
        %v1959 = vld [vmem:[#allocation2 + $0x38] sm:$0xff]
        %v1960 = vld [vmem:[#allocation2 + $0x40] sm:$0xff]
        %v1961 = vld [vmem:[#allocation2 + $0x48] sm:$0xff]
        %v1962 = vld [vmem:[#allocation2 + $0x50] sm:$0x7]
        %s1963 = scalar_lea.vmem %s2, 14
        %v1964 = vld [vmem:[%s1963] sm:$0x3]
        %vm1965 = vsmask.f32 5376
        %v1967 = vshrl.u32 %v1954, 16
        %v1969 = vrot.slane %v1967, 2
        %v1970 = vshll.u32 %v1954, 16
        %v1972 = vrot.slane %v1970, 3
        %v1973 = vor.u32 %v1969, %v1972
        %v1975 = vshrl.u32 %v1955, 16
        %v1977 = vrot.slane %v1975, 2
        %v1978 = vshll.u32 %v1955, 16
        %v1980 = vrot.slane %v1978, 3
        %v1981 = vor.u32 %v1977, %v1980
        %v1982 = vsel %vm1965, %v1973, %v1981
        %v1984 = vshrl.u32 %v1956, 16
        %v1986 = vrot.slane %v1984, 2
        %v1987 = vshll.u32 %v1956, 16
        %v1989 = vrot.slane %v1987, 3
        %v1990 = vor.u32 %v1986, %v1989
        %v1991 = vsel %vm1965, %v1981, %v1990
        %v1993 = vshrl.u32 %v1957, 16
        %v1995 = vrot.slane %v1993, 2
        %v1996 = vshll.u32 %v1957, 16
        %v1998 = vrot.slane %v1996, 3
        %v1999 = vor.u32 %v1995, %v1998
        %v2000 = vsel %vm1965, %v1990, %v1999
        %v2002 = vshrl.u32 %v1958, 16
        %v2004 = vrot.slane %v2002, 2
        %v2005 = vshll.u32 %v1958, 16
        %v2007 = vrot.slane %v2005, 3
        %v2008 = vor.u32 %v2004, %v2007
        %v2009 = vsel %vm1965, %v1999, %v2008
        %v2011 = vshrl.u32 %v1959, 16
        %v2013 = vrot.slane %v2011, 2
        %v2014 = vshll.u32 %v1959, 16
        %v2016 = vrot.slane %v2014, 3
        %v2017 = vor.u32 %v2013, %v2016
        %v2018 = vsel %vm1965, %v2008, %v2017
        %v2020 = vshrl.u32 %v1960, 16
        %v2022 = vrot.slane %v2020, 2
        %v2023 = vshll.u32 %v1960, 16
        %v2025 = vrot.slane %v2023, 3
        %v2026 = vor.u32 %v2022, %v2025
        %v2027 = vsel %vm1965, %v2017, %v2026
        %v2029 = vshrl.u32 %v1961, 16
        %v2031 = vrot.slane %v2029, 2
        %v2032 = vshll.u32 %v1961, 16
        %v2034 = vrot.slane %v2032, 3
        %v2035 = vor.u32 %v2031, %v2034
        %v2036 = vsel %vm1965, %v2026, %v2035
        %v2038 = vshrl.u32 %v1962, 16
        %v2040 = vrot.slane %v2038, 2
        %v2041 = vshll.u32 %v1962, 16
        %v2043 = vrot.slane %v2041, 3
        %v2044 = vor.u32 %v2040, %v2043
        %v2045 = vsel %vm1965, %v2035, %v2044
        %v2047 = vsel %vm353, %v1982, 0
        %v2050 = vsel %vm353, %v1991, 0
        %v2053 = vsel %vm353, %v2000, 0
        %v2056 = vsel %vm353, %v2009, 0
        %v2059 = vsel %vm353, %v2018, 0
        %v2062 = vsel %vm353, %v2027, 0
        %v2065 = vsel %vm353, %v2036, 0
        %v2068 = vsel %vm353, %v2045, 0
        %v2071 = vsel %vm467, %v1964, 0
        %2073 = vmatprep.subr.bf16.mxu0 0
        %2074 = vmatpush1.bf16.msra.mxu0 %v2071
        %2075 = vmatprep.subr.bf16.mxu0 0
        %2076 = vmatpush1.bf16.msra.mxu0 0
        %2077 = vmatprep.subr.bf16.mxu0 0
        %2078 = vmatpush1.bf16.msra.mxu0 0
        %2079 = vmatprep.subr.bf16.mxu0 0
        %2080 = vmatpush1.bf16.msra.mxu0 0
        %2081 = vmatprep.subr.bf16.mxu0 0
        %2082 = vmatpush1.bf16.msra.mxu0 0
        %2083 = vmatprep.subr.bf16.mxu0 0
        %2084 = vmatpush1.bf16.msra.mxu0 0
        %2085 = vmatprep.subr.bf16.mxu0 0
        %2086 = vmatpush1.bf16.msra.mxu0 0
        %2087 = vmatprep.subr.bf16.mxu0 0
        %2088 = vmatpush1.bf16.msra.mxu0 0
        %2089 = vmatprep.subr.bf16.mxu0 0
        %2090 = vmatpush1.bf16.msra.mxu0 0
        %2091 = vmatprep.subr.bf16.mxu0 0
        %2092 = vmatpush1.bf16.msra.mxu0 0
        %2093 = vmatprep.subr.bf16.mxu0 0
        %2094 = vmatpush1.bf16.msra.mxu0 0
        %2095 = vmatprep.subr.bf16.mxu0 0
        %2096 = vmatpush1.bf16.msra.mxu0 0
        %2097 = vmatprep.subr.bf16.mxu0 0
        %2098 = vmatpush1.bf16.msra.mxu0 0
        %2099 = vmatprep.subr.bf16.mxu0 0
        %2100 = vmatpush1.bf16.msra.mxu0 0
        %2101 = vmatprep.subr.bf16.mxu0 0
        %2102 = vmatpush1.bf16.msra.mxu0 0
        %2103 = vmatprep.subr.bf16.mxu0 0
        %2104 = vmatpush1.bf16.msra.mxu0 0
        %2105 = vmatprep.mubr.bf16.mxu0 0
        %2106 = vmatmul.mubr.bf16.gmra.mrb[0].mxu0 %v2047
        %v2107 = vpop.f32.mrb[0].mxu0
        %v2108 = vadd.f32 0.0, %v2107
        %v2109 = vpop.f32.mrb[0].mxu0
        %v2110 = vpop.f32.mrb[0].mxu0
        %v2111 = vadd.f32 0.0, %v2110
        %v2112 = vpop.f32.mrb[0].mxu0
        %2113 = vmatprep.mubr.bf16.mxu0 0
        %2114 = vmatmul.mubr.bf16.gmra.mrb[0].mxu0 %v2050
        %v2115 = vpop.f32.mrb[0].mxu0
        %v2116 = vadd.f32 0.0, %v2115
        %v2117 = vpop.f32.mrb[0].mxu0
        %v2118 = vpop.f32.mrb[0].mxu0
        %v2119 = vadd.f32 0.0, %v2118
        %v2120 = vpop.f32.mrb[0].mxu0
        %2121 = vmatprep.mubr.bf16.mxu0 0
        %2122 = vmatmul.mubr.bf16.gmra.mrb[0].mxu0 %v2053
        %v2123 = vpop.f32.mrb[0].mxu0
        %v2124 = vadd.f32 0.0, %v2123
        %v2125 = vpop.f32.mrb[0].mxu0
        %v2126 = vpop.f32.mrb[0].mxu0
        %v2127 = vadd.f32 0.0, %v2126
        %v2128 = vpop.f32.mrb[0].mxu0
        %2129 = vmatprep.mubr.bf16.mxu0 0
        %2130 = vmatmul.mubr.bf16.gmra.mrb[0].mxu0 %v2056
        %v2131 = vpop.f32.mrb[0].mxu0
        %v2132 = vadd.f32 0.0, %v2131
        %v2133 = vpop.f32.mrb[0].mxu0
        %v2134 = vpop.f32.mrb[0].mxu0
        %v2135 = vadd.f32 0.0, %v2134
        %v2136 = vpop.f32.mrb[0].mxu0
        %2137 = vmatprep.mubr.bf16.mxu0 0
        %2138 = vmatmul.mubr.bf16.gmra.mrb[0].mxu0 %v2059
        %v2139 = vpop.f32.mrb[0].mxu0
        %v2140 = vadd.f32 0.0, %v2139
        %v2141 = vpop.f32.mrb[0].mxu0
        %v2142 = vpop.f32.mrb[0].mxu0
        %v2143 = vadd.f32 0.0, %v2142
        %v2144 = vpop.f32.mrb[0].mxu0
        %2145 = vmatprep.mubr.bf16.mxu0 0
        %2146 = vmatmul.mubr.bf16.gmra.mrb[0].mxu0 %v2062
        %v2147 = vpop.f32.mrb[0].mxu0
        %v2148 = vadd.f32 0.0, %v2147
        %v2149 = vpop.f32.mrb[0].mxu0
        %v2150 = vpop.f32.mrb[0].mxu0
        %v2151 = vadd.f32 0.0, %v2150
        %v2152 = vpop.f32.mrb[0].mxu0
        %2153 = vmatprep.mubr.bf16.mxu0 0
        %2154 = vmatmul.mubr.bf16.gmra.mrb[0].mxu0 %v2065
        %v2155 = vpop.f32.mrb[0].mxu0
        %v2156 = vadd.f32 0.0, %v2155
        %v2157 = vpop.f32.mrb[0].mxu0
        %v2158 = vpop.f32.mrb[0].mxu0
        %v2159 = vadd.f32 0.0, %v2158
        %v2160 = vpop.f32.mrb[0].mxu0
        %2161 = vmatprep.mubr.bf16.mxu0 0
        %2162 = vmatmul.mubr.bf16.gmra.mrb[0].mxu0 %v2068
        %v2163 = vpop.f32.mrb[0].mxu0
        %v2164 = vadd.f32 0.0, %v2163
        %v2165 = vpop.f32.mrb[0].mxu0
        %v2166 = vpop.f32.mrb[0].mxu0
        %v2167 = vadd.f32 0.0, %v2166
        %v2168 = vpop.f32.mrb[0].mxu0
        %2169 = vdwg.mxu0
        %v2170 = vadd.f32 %v1938, %v2108
        %v2171 = vadd.f32 %v1939, %v2111
        %v2172 = vadd.f32 %v1940, %v2116
        %v2173 = vadd.f32 %v1941, %v2119
        %v2174 = vadd.f32 %v1942, %v2124
        %v2175 = vadd.f32 %v1943, %v2127
        %v2176 = vadd.f32 %v1944, %v2132
        %v2177 = vadd.f32 %v1945, %v2135
        %v2178 = vadd.f32 %v1946, %v2140
        %v2179 = vadd.f32 %v1947, %v2143
        %v2180 = vadd.f32 %v1948, %v2148
        %v2181 = vadd.f32 %v1949, %v2151
        %v2182 = vadd.f32 %v1950, %v2156
        %v2183 = vadd.f32 %v1951, %v2159
        %v2184 = vadd.f32 %v1952, %v2164
        %v2185 = vadd.f32 %v1953, %v2167
        %2186 = vst [vmem:[#allocation3] sm:$0xff] %v2170
        %2187 = vst [vmem:[#allocation3 + $0x8] sm:$0xff] %v2171
        %2188 = vst [vmem:[#allocation3 + $0x10] sm:$0xff] %v2172
        %2189 = vst [vmem:[#allocation3 + $0x18] sm:$0xff] %v2173
        %2190 = vst [vmem:[#allocation3 + $0x20] sm:$0xff] %v2174
        %2191 = vst [vmem:[#allocation3 + $0x28] sm:$0xff] %v2175
        %2192 = vst [vmem:[#allocation3 + $0x30] sm:$0xff] %v2176
        %2193 = vst [vmem:[#allocation3 + $0x38] sm:$0xff] %v2177
        %2194 = vst [vmem:[#allocation3 + $0x40] sm:$0xff] %v2178
        %2195 = vst [vmem:[#allocation3 + $0x48] sm:$0xff] %v2179
        %2196 = vst [vmem:[#allocation3 + $0x50] sm:$0xff] %v2180
        %2197 = vst [vmem:[#allocation3 + $0x58] sm:$0xff] %v2181
        %2198 = vst [vmem:[#allocation3 + $0x60] sm:$0xff] %v2182
        %2199 = vst [vmem:[#allocation3 + $0x68] sm:$0xff] %v2183
        %2200 = vst [vmem:[#allocation3 + $0x70] sm:$0xff] %v2184
        %2201 = vst [vmem:[#allocation3 + $0x78] sm:$0xff] %v2185
        %v2202 = vld [vmem:[#allocation3] sm:$0xff]
        %v2203 = vld [vmem:[#allocation3 + $0x8] sm:$0xff]
        %v2204 = vld [vmem:[#allocation3 + $0x10] sm:$0xff]
        %v2205 = vld [vmem:[#allocation3 + $0x18] sm:$0xff]
        %v2206 = vld [vmem:[#allocation3 + $0x20] sm:$0xff]
        %v2207 = vld [vmem:[#allocation3 + $0x28] sm:$0xff]
        %v2208 = vld [vmem:[#allocation3 + $0x30] sm:$0xff]
        %v2209 = vld [vmem:[#allocation3 + $0x38] sm:$0xff]
        %v2210 = vld [vmem:[#allocation3 + $0x40] sm:$0xff]
        %v2211 = vld [vmem:[#allocation3 + $0x48] sm:$0xff]
        %v2212 = vld [vmem:[#allocation3 + $0x50] sm:$0xff]
        %v2213 = vld [vmem:[#allocation3 + $0x58] sm:$0xff]
        %v2214 = vld [vmem:[#allocation3 + $0x60] sm:$0xff]
        %v2215 = vld [vmem:[#allocation3 + $0x68] sm:$0xff]
        %v2216 = vld [vmem:[#allocation3 + $0x70] sm:$0xff]
        %v2217 = vld [vmem:[#allocation3 + $0x78] sm:$0xff]
        %v2218 = vld [vmem:[#allocation2 + $0x10] sm:$0xf8]
        %v2219 = vld [vmem:[#allocation2 + $0x18] sm:$0xff]
        %v2220 = vld [vmem:[#allocation2 + $0x20] sm:$0xff]
        %v2221 = vld [vmem:[#allocation2 + $0x28] sm:$0xff]
        %v2222 = vld [vmem:[#allocation2 + $0x30] sm:$0xff]
        %v2223 = vld [vmem:[#allocation2 + $0x38] sm:$0xff]
        %v2224 = vld [vmem:[#allocation2 + $0x40] sm:$0xff]
        %v2225 = vld [vmem:[#allocation2 + $0x48] sm:$0xff]
        %v2226 = vld [vmem:[#allocation2 + $0x50] sm:$0x7]
        %s2227 = scalar_lea.vmem %s2, 16
        %v2228 = vld [vmem:[%s2227] sm:$0x3]
        %vm2238 = vcmask 1044480
        %v2239 = vrot.slane %v2218, 3
        %v2240 = vrot.slane %v2219, 3
        %v2241 = vsel %vm2238, %v2239, %v2240
        %v2242 = vrot.slane %v2220, 3
        %v2243 = vsel %vm2238, %v2240, %v2242
        %v2244 = vrot.slane %v2221, 3
        %v2245 = vsel %vm2238, %v2242, %v2244
        %v2246 = vrot.slane %v2222, 3
        %v2247 = vsel %vm2238, %v2244, %v2246
        %v2248 = vrot.slane %v2223, 3
        %v2249 = vsel %vm2238, %v2246, %v2248
        %v2250 = vrot.slane %v2224, 3
        %v2251 = vsel %vm2238, %v2248, %v2250
        %v2252 = vrot.slane %v2225, 3
        %v2253 = vsel %vm2238, %v2250, %v2252
        %v2254 = vrot.slane %v2226, 3
        %v2255 = vsel %vm2238, %v2252, %v2254
        %v2257 = vsel %vm353, %v2241, 0
        %v2260 = vsel %vm353, %v2243, 0
        %v2263 = vsel %vm353, %v2245, 0
        %v2266 = vsel %vm353, %v2247, 0
        %v2269 = vsel %vm353, %v2249, 0
        %v2272 = vsel %vm353, %v2251, 0
        %v2275 = vsel %vm353, %v2253, 0
        %v2278 = vsel %vm353, %v2255, 0
        %v2281 = vsel %vm467, %v2228, 0
        %2283 = vmatprep.subr.bf16.mxu0 0
        %2284 = vmatpush1.bf16.msra.mxu0 %v2281
        %2285 = vmatprep.subr.bf16.mxu0 0
        %2286 = vmatpush1.bf16.msra.mxu0 0
        %2287 = vmatprep.subr.bf16.mxu0 0
        %2288 = vmatpush1.bf16.msra.mxu0 0
        %2289 = vmatprep.subr.bf16.mxu0 0
        %2290 = vmatpush1.bf16.msra.mxu0 0
        %2291 = vmatprep.subr.bf16.mxu0 0
        %2292 = vmatpush1.bf16.msra.mxu0 0
        %2293 = vmatprep.subr.bf16.mxu0 0
        %2294 = vmatpush1.bf16.msra.mxu0 0
        %2295 = vmatprep.subr.bf16.mxu0 0
        %2296 = vmatpush1.bf16.msra.mxu0 0
        %2297 = vmatprep.subr.bf16.mxu0 0
        %2298 = vmatpush1.bf16.msra.mxu0 0
        %2299 = vmatprep.subr.bf16.mxu0 0
        %2300 = vmatpush1.bf16.msra.mxu0 0
        %2301 = vmatprep.subr.bf16.mxu0 0
        %2302 = vmatpush1.bf16.msra.mxu0 0
        %2303 = vmatprep.subr.bf16.mxu0 0
        %2304 = vmatpush1.bf16.msra.mxu0 0
        %2305 = vmatprep.subr.bf16.mxu0 0
        %2306 = vmatpush1.bf16.msra.mxu0 0
        %2307 = vmatprep.subr.bf16.mxu0 0
        %2308 = vmatpush1.bf16.msra.mxu0 0
        %2309 = vmatprep.subr.bf16.mxu0 0
        %2310 = vmatpush1.bf16.msra.mxu0 0
        %2311 = vmatprep.subr.bf16.mxu0 0
        %2312 = vmatpush1.bf16.msra.mxu0 0
        %2313 = vmatprep.subr.bf16.mxu0 0
        %2314 = vmatpush1.bf16.msra.mxu0 0
        %2315 = vmatprep.mubr.bf16.mxu0 0
        %2316 = vmatmul.mubr.bf16.gmra.mrb[0].mxu0 %v2257
        %v2317 = vpop.f32.mrb[0].mxu0
        %v2318 = vadd.f32 0.0, %v2317
        %v2319 = vpop.f32.mrb[0].mxu0
        %v2320 = vpop.f32.mrb[0].mxu0
        %v2321 = vadd.f32 0.0, %v2320
        %v2322 = vpop.f32.mrb[0].mxu0
        %2323 = vmatprep.mubr.bf16.mxu0 0
        %2324 = vmatmul.mubr.bf16.gmra.mrb[0].mxu0 %v2260
        %v2325 = vpop.f32.mrb[0].mxu0
        %v2326 = vadd.f32 0.0, %v2325
        %v2327 = vpop.f32.mrb[0].mxu0
        %v2328 = vpop.f32.mrb[0].mxu0
        %v2329 = vadd.f32 0.0, %v2328
        %v2330 = vpop.f32.mrb[0].mxu0
        %2331 = vmatprep.mubr.bf16.mxu0 0
        %2332 = vmatmul.mubr.bf16.gmra.mrb[0].mxu0 %v2263
        %v2333 = vpop.f32.mrb[0].mxu0
        %v2334 = vadd.f32 0.0, %v2333
        %v2335 = vpop.f32.mrb[0].mxu0
        %v2336 = vpop.f32.mrb[0].mxu0
        %v2337 = vadd.f32 0.0, %v2336
        %v2338 = vpop.f32.mrb[0].mxu0
        %2339 = vmatprep.mubr.bf16.mxu0 0
        %2340 = vmatmul.mubr.bf16.gmra.mrb[0].mxu0 %v2266
        %v2341 = vpop.f32.mrb[0].mxu0
        %v2342 = vadd.f32 0.0, %v2341
        %v2343 = vpop.f32.mrb[0].mxu0
        %v2344 = vpop.f32.mrb[0].mxu0
        %v2345 = vadd.f32 0.0, %v2344
        %v2346 = vpop.f32.mrb[0].mxu0
        %2347 = vmatprep.mubr.bf16.mxu0 0
        %2348 = vmatmul.mubr.bf16.gmra.mrb[0].mxu0 %v2269
        %v2349 = vpop.f32.mrb[0].mxu0
        %v2350 = vadd.f32 0.0, %v2349
        %v2351 = vpop.f32.mrb[0].mxu0
        %v2352 = vpop.f32.mrb[0].mxu0
        %v2353 = vadd.f32 0.0, %v2352
        %v2354 = vpop.f32.mrb[0].mxu0
        %2355 = vmatprep.mubr.bf16.mxu0 0
        %2356 = vmatmul.mubr.bf16.gmra.mrb[0].mxu0 %v2272
        %v2357 = vpop.f32.mrb[0].mxu0
        %v2358 = vadd.f32 0.0, %v2357
        %v2359 = vpop.f32.mrb[0].mxu0
        %v2360 = vpop.f32.mrb[0].mxu0
        %v2361 = vadd.f32 0.0, %v2360
        %v2362 = vpop.f32.mrb[0].mxu0
        %2363 = vmatprep.mubr.bf16.mxu0 0
        %2364 = vmatmul.mubr.bf16.gmra.mrb[0].mxu0 %v2275
        %v2365 = vpop.f32.mrb[0].mxu0
        %v2366 = vadd.f32 0.0, %v2365
        %v2367 = vpop.f32.mrb[0].mxu0
        %v2368 = vpop.f32.mrb[0].mxu0
        %v2369 = vadd.f32 0.0, %v2368
        %v2370 = vpop.f32.mrb[0].mxu0
        %2371 = vmatprep.mubr.bf16.mxu0 0
        %2372 = vmatmul.mubr.bf16.gmra.mrb[0].mxu0 %v2278
        %v2373 = vpop.f32.mrb[0].mxu0
        %v2374 = vadd.f32 0.0, %v2373
        %v2375 = vpop.f32.mrb[0].mxu0
        %v2376 = vpop.f32.mrb[0].mxu0
        %v2377 = vadd.f32 0.0, %v2376
        %v2378 = vpop.f32.mrb[0].mxu0
        %2379 = vdwg.mxu0
        %v2380 = vadd.f32 %v2202, %v2318
        %v2381 = vadd.f32 %v2203, %v2321
        %v2382 = vadd.f32 %v2204, %v2326
        %v2383 = vadd.f32 %v2205, %v2329
        %v2384 = vadd.f32 %v2206, %v2334
        %v2385 = vadd.f32 %v2207, %v2337
        %v2386 = vadd.f32 %v2208, %v2342
        %v2387 = vadd.f32 %v2209, %v2345
        %v2388 = vadd.f32 %v2210, %v2350
        %v2389 = vadd.f32 %v2211, %v2353
        %v2390 = vadd.f32 %v2212, %v2358
        %v2391 = vadd.f32 %v2213, %v2361
        %v2392 = vadd.f32 %v2214, %v2366
        %v2393 = vadd.f32 %v2215, %v2369
        %v2394 = vadd.f32 %v2216, %v2374
        %v2395 = vadd.f32 %v2217, %v2377
        %2396 = vst [vmem:[#allocation3] sm:$0xff] %v2380
        %2397 = vst [vmem:[#allocation3 + $0x8] sm:$0xff] %v2381
        %2398 = vst [vmem:[#allocation3 + $0x10] sm:$0xff] %v2382
        %2399 = vst [vmem:[#allocation3 + $0x18] sm:$0xff] %v2383
        %2400 = vst [vmem:[#allocation3 + $0x20] sm:$0xff] %v2384
        %2401 = vst [vmem:[#allocation3 + $0x28] sm:$0xff] %v2385
        %2402 = vst [vmem:[#allocation3 + $0x30] sm:$0xff] %v2386
        %2403 = vst [vmem:[#allocation3 + $0x38] sm:$0xff] %v2387
        %2404 = vst [vmem:[#allocation3 + $0x40] sm:$0xff] %v2388
        %2405 = vst [vmem:[#allocation3 + $0x48] sm:$0xff] %v2389
        %2406 = vst [vmem:[#allocation3 + $0x50] sm:$0xff] %v2390
        %2407 = vst [vmem:[#allocation3 + $0x58] sm:$0xff] %v2391
        %2408 = vst [vmem:[#allocation3 + $0x60] sm:$0xff] %v2392
        %2409 = vst [vmem:[#allocation3 + $0x68] sm:$0xff] %v2393
        %2410 = vst [vmem:[#allocation3 + $0x70] sm:$0xff] %v2394
        %2411 = vst [vmem:[#allocation3 + $0x78] sm:$0xff] %v2395
        %v2412 = vld [vmem:[#allocation3] sm:$0xff]
        %v2413 = vld [vmem:[#allocation3 + $0x8] sm:$0xff]
        %v2414 = vld [vmem:[#allocation3 + $0x10] sm:$0xff]
        %v2415 = vld [vmem:[#allocation3 + $0x18] sm:$0xff]
        %v2416 = vld [vmem:[#allocation3 + $0x20] sm:$0xff]
        %v2417 = vld [vmem:[#allocation3 + $0x28] sm:$0xff]
        %v2418 = vld [vmem:[#allocation3 + $0x30] sm:$0xff]
        %v2419 = vld [vmem:[#allocation3 + $0x38] sm:$0xff]
        %v2420 = vld [vmem:[#allocation3 + $0x40] sm:$0xff]
        %v2421 = vld [vmem:[#allocation3 + $0x48] sm:$0xff]
        %v2422 = vld [vmem:[#allocation3 + $0x50] sm:$0xff]
        %v2423 = vld [vmem:[#allocation3 + $0x58] sm:$0xff]
        %v2424 = vld [vmem:[#allocation3 + $0x60] sm:$0xff]
        %v2425 = vld [vmem:[#allocation3 + $0x68] sm:$0xff]
        %v2426 = vld [vmem:[#allocation3 + $0x70] sm:$0xff]
        %v2427 = vld [vmem:[#allocation3 + $0x78] sm:$0xff]
        %v2428 = vpack.c.bf16 %v2413, %v2412
        %v2429 = vpack.c.bf16 %v2415, %v2414
        %v2430 = vpack.c.bf16 %v2417, %v2416
        %v2431 = vpack.c.bf16 %v2419, %v2418
        %v2432 = vpack.c.bf16 %v2421, %v2420
        %v2433 = vpack.c.bf16 %v2423, %v2422
        %v2434 = vpack.c.bf16 %v2425, %v2424
        %v2435 = vpack.c.bf16 %v2427, %v2426
        %v2444 = vunpack.c.l.b16 %v2428
        %v2445 = vunpack.c.h.b16 %v2428
        %v2446 = vunpack.c.l.b16 %v2429
        %v2447 = vunpack.c.h.b16 %v2429
        %v2448 = vunpack.c.l.b16 %v2430
        %v2449 = vunpack.c.h.b16 %v2430
        %v2450 = vunpack.c.l.b16 %v2431
        %v2451 = vunpack.c.h.b16 %v2431
        %v2452 = vunpack.c.l.b16 %v2432
        %v2453 = vunpack.c.h.b16 %v2432
        %v2454 = vunpack.c.l.b16 %v2433
        %v2455 = vunpack.c.h.b16 %v2433
        %v2456 = vunpack.c.l.b16 %v2434
        %v2457 = vunpack.c.h.b16 %v2434
        %v2458 = vunpack.c.l.b16 %v2435
        %v2459 = vunpack.c.h.b16 %v2435
        %v2460 = vpack.c.b16 %v2444, %v2444
        %v2461 = vpack.c.b16 %v2445, %v2445
        %v2462 = vpack.c.b16 %v2446, %v2446
        %v2463 = vpack.c.b16 %v2447, %v2447
        %v2464 = vpack.c.b16 %v2448, %v2448
        %v2465 = vpack.c.b16 %v2449, %v2449
        %v2466 = vpack.c.b16 %v2450, %v2450
        %v2467 = vpack.c.b16 %v2451, %v2451
        %v2468 = vpack.c.b16 %v2452, %v2452
        %v2469 = vpack.c.b16 %v2453, %v2453
        %v2470 = vpack.c.b16 %v2454, %v2454
        %v2471 = vpack.c.b16 %v2455, %v2455
        %v2472 = vpack.c.b16 %v2456, %v2456
        %v2473 = vpack.c.b16 %v2457, %v2457
        %v2474 = vpack.c.b16 %v2458, %v2458
        %v2475 = vpack.c.b16 %v2459, %v2459
        %2492 = vst [vmem:[%s259] sm:$0xf] %v2460
        %2493 = vst [vmem:[%s259 + $0x4] sm:$0xf] %v2461
        %2494 = vst [vmem:[%s259 + $0x8] sm:$0xf] %v2462
        %2495 = vst [vmem:[%s259 + $0xc] sm:$0xf] %v2463
        %2496 = vst [vmem:[%s259 + $0x10] sm:$0xf] %v2464
        %2497 = vst [vmem:[%s259 + $0x14] sm:$0xf] %v2465
        %2498 = vst [vmem:[%s259 + $0x18] sm:$0xf] %v2466
        %2499 = vst [vmem:[%s259 + $0x1c] sm:$0xf] %v2467
        %2500 = vst [vmem:[%s259 + $0x20] sm:$0xf] %v2468
        %2501 = vst [vmem:[%s259 + $0x24] sm:$0xf] %v2469
        %2502 = vst [vmem:[%s259 + $0x28] sm:$0xf] %v2470
        %2503 = vst [vmem:[%s259 + $0x2c] sm:$0xf] %v2471
        %2504 = vst [vmem:[%s259 + $0x30] sm:$0xf] %v2472
        %2505 = vst [vmem:[%s259 + $0x34] sm:$0xf] %v2473
        %2506 = vst [vmem:[%s259 + $0x38] sm:$0xf] %v2474
        %2507 = vst [vmem:[%s259 + $0x3c] sm:$0xf] %v2475
        %v2508 = vld [vmem:[%s285] sm:$0xff]
        %v2509 = vld [vmem:[%s285 + $0x8] sm:$0xff]
        %v2510 = vld [vmem:[%s285 + $0x10] sm:$0xff]
        %v2511 = vld [vmem:[%s285 + $0x18] sm:$0xff]
        %v2512 = vld [vmem:[%s285 + $0x20] sm:$0xff]
        %v2513 = vld [vmem:[%s285 + $0x28] sm:$0xff]
        %v2514 = vld [vmem:[%s285 + $0x30] sm:$0xff]
        %v2515 = vld [vmem:[%s285 + $0x38] sm:$0xff]
        %v2516 = vld [vmem:[%s285 + $0x40] sm:$0xff]
        %v2517 = vld [vmem:[%s285 + $0x48] sm:$0xff]
        %v2518 = vld [vmem:[%s285 + $0x50] sm:$0xff]
        %v2519 = vld [vmem:[%s285 + $0x58] sm:$0xff]
        %v2520 = vld [vmem:[%s285 + $0x60] sm:$0xff]
        %v2521 = vld [vmem:[%s285 + $0x68] sm:$0xff]
        %v2522 = vld [vmem:[%s285 + $0x70] sm:$0xff]
        %v2523 = vld [vmem:[%s285 + $0x78] sm:$0xff]
        %2525 = vset.pattern.permute.xlu0 0
        %2526 = vperm.xlu0 %2525, %v2508
        %v2527 = vpop.permute.xlu0 %2526
        %2530 = vset.pattern.permute.xlu0 0
        %2531 = vperm.xlu0 %2530, %v2509
        %v2532 = vpop.permute.xlu0 %2531
        %2535 = vset.pattern.permute.xlu0 0
        %2536 = vperm.xlu0 %2535, %v2510
        %v2537 = vpop.permute.xlu0 %2536
        %2540 = vset.pattern.permute.xlu0 0
        %2541 = vperm.xlu0 %2540, %v2511
        %v2542 = vpop.permute.xlu0 %2541
        %2545 = vset.pattern.permute.xlu0 0
        %2546 = vperm.xlu0 %2545, %v2512
        %v2547 = vpop.permute.xlu0 %2546
        %2550 = vset.pattern.permute.xlu0 0
        %2551 = vperm.xlu0 %2550, %v2513
        %v2552 = vpop.permute.xlu0 %2551
        %2555 = vset.pattern.permute.xlu0 0
        %2556 = vperm.xlu0 %2555, %v2514
        %v2557 = vpop.permute.xlu0 %2556
        %2560 = vset.pattern.permute.xlu0 0
        %2561 = vperm.xlu0 %2560, %v2515
        %v2562 = vpop.permute.xlu0 %2561
        %2565 = vset.pattern.permute.xlu0 0
        %2566 = vperm.xlu0 %2565, %v2516
        %v2567 = vpop.permute.xlu0 %2566
        %2570 = vset.pattern.permute.xlu0 0
        %2571 = vperm.xlu0 %2570, %v2517
        %v2572 = vpop.permute.xlu0 %2571
        %2575 = vset.pattern.permute.xlu0 0
        %2576 = vperm.xlu0 %2575, %v2518
        %v2577 = vpop.permute.xlu0 %2576
        %2580 = vset.pattern.permute.xlu0 0
        %2581 = vperm.xlu0 %2580, %v2519
        %v2582 = vpop.permute.xlu0 %2581
        %2585 = vset.pattern.permute.xlu0 0
        %2586 = vperm.xlu0 %2585, %v2520
        %v2587 = vpop.permute.xlu0 %2586
        %2590 = vset.pattern.permute.xlu0 0
        %2591 = vperm.xlu0 %2590, %v2521
        %v2592 = vpop.permute.xlu0 %2591
        %2595 = vset.pattern.permute.xlu0 0
        %2596 = vperm.xlu0 %2595, %v2522
        %v2597 = vpop.permute.xlu0 %2596
        %2600 = vset.pattern.permute.xlu0 0
        %2601 = vperm.xlu0 %2600, %v2523
        %v2602 = vpop.permute.xlu0 %2601
        %v2604 = vmul.f32 %v2412, %v2527
        %v2605 = vmul.f32 %v2413, %v2532
        %v2606 = vmul.f32 %v2414, %v2537
        %v2607 = vmul.f32 %v2415, %v2542
        %v2608 = vmul.f32 %v2416, %v2547
        %v2609 = vmul.f32 %v2417, %v2552
        %v2610 = vmul.f32 %v2418, %v2557
        %v2611 = vmul.f32 %v2419, %v2562
        %v2612 = vmul.f32 %v2420, %v2567
        %v2613 = vmul.f32 %v2421, %v2572
        %v2614 = vmul.f32 %v2422, %v2577
        %v2615 = vmul.f32 %v2423, %v2582
        %v2616 = vmul.f32 %v2424, %v2587
        %v2617 = vmul.f32 %v2425, %v2592
        %v2618 = vmul.f32 %v2426, %v2597
        %v2619 = vmul.f32 %v2427, %v2602
        %v2620 = vadd.f32 %v2604, %v2605
        %v2621 = vadd.f32 %v2620, %v2606
        %v2622 = vadd.f32 %v2621, %v2607
        %v2623 = vadd.f32 %v2622, %v2608
        %v2624 = vadd.f32 %v2623, %v2609
        %v2625 = vadd.f32 %v2624, %v2610
        %v2626 = vadd.f32 %v2625, %v2611
        %v2627 = vadd.f32 %v2626, %v2612
        %v2628 = vadd.f32 %v2627, %v2613
        %v2629 = vadd.f32 %v2628, %v2614
        %v2630 = vadd.f32 %v2629, %v2615
        %v2631 = vadd.f32 %v2630, %v2616
        %v2632 = vadd.f32 %v2631, %v2617
        %v2633 = vadd.f32 %v2632, %v2618
        %v2634 = vadd.f32 %v2633, %v2619
        %v2635 = vrot.slane %v2634, 4
        %v2636 = vadd.f32 %v2634, %v2635
        %v2637 = vrot.slane %v2636, 2
        %v2638 = vadd.f32 %v2636, %v2637
        %v2639 = vrot.slane %v2638, 1
        %v2640 = vadd.f32 %v2638, %v2639
        %v2641 = vmul.f32 %v2412, %v2412
        %v2642 = vmul.f32 %v2413, %v2413
        %v2643 = vmul.f32 %v2414, %v2414
        %v2644 = vmul.f32 %v2415, %v2415
        %v2645 = vmul.f32 %v2416, %v2416
        %v2646 = vmul.f32 %v2417, %v2417
        %v2647 = vmul.f32 %v2418, %v2418
        %v2648 = vmul.f32 %v2419, %v2419
        %v2649 = vmul.f32 %v2420, %v2420
        %v2650 = vmul.f32 %v2421, %v2421
        %v2651 = vmul.f32 %v2422, %v2422
        %v2652 = vmul.f32 %v2423, %v2423
        %v2653 = vmul.f32 %v2424, %v2424
        %v2654 = vmul.f32 %v2425, %v2425
        %v2655 = vmul.f32 %v2426, %v2426
        %v2656 = vmul.f32 %v2427, %v2427
        %v2657 = vmul.f32 %v2641, %v2527
        %v2658 = vmul.f32 %v2642, %v2532
        %v2659 = vmul.f32 %v2643, %v2537
        %v2660 = vmul.f32 %v2644, %v2542
        %v2661 = vmul.f32 %v2645, %v2547
        %v2662 = vmul.f32 %v2646, %v2552
        %v2663 = vmul.f32 %v2647, %v2557
        %v2664 = vmul.f32 %v2648, %v2562
        %v2665 = vmul.f32 %v2649, %v2567
        %v2666 = vmul.f32 %v2650, %v2572
        %v2667 = vmul.f32 %v2651, %v2577
        %v2668 = vmul.f32 %v2652, %v2582
        %v2669 = vmul.f32 %v2653, %v2587
        %v2670 = vmul.f32 %v2654, %v2592
        %v2671 = vmul.f32 %v2655, %v2597
        %v2672 = vmul.f32 %v2656, %v2602
        %v2673 = vadd.f32 %v2657, %v2658
        %v2674 = vadd.f32 %v2673, %v2659
        %v2675 = vadd.f32 %v2674, %v2660
        %v2676 = vadd.f32 %v2675, %v2661
        %v2677 = vadd.f32 %v2676, %v2662
        %v2678 = vadd.f32 %v2677, %v2663
        %v2679 = vadd.f32 %v2678, %v2664
        %v2680 = vadd.f32 %v2679, %v2665
        %v2681 = vadd.f32 %v2680, %v2666
        %v2682 = vadd.f32 %v2681, %v2667
        %v2683 = vadd.f32 %v2682, %v2668
        %v2684 = vadd.f32 %v2683, %v2669
        %v2685 = vadd.f32 %v2684, %v2670
        %v2686 = vadd.f32 %v2685, %v2671
        %v2687 = vadd.f32 %v2686, %v2672
        %v2688 = vrot.slane %v2687, 4
        %v2689 = vadd.f32 %v2687, %v2688
        %v2690 = vrot.slane %v2689, 2
        %v2691 = vadd.f32 %v2689, %v2690
        %v2692 = vrot.slane %v2691, 1
        %v2693 = vadd.f32 %v2691, %v2692
        %vm2694 = vcmask 1040384
        %v2695 = vsel %vm2694, %v2640, %v2693
        %2696 = vst [vmem:[%s266] sm:$0x3] %v2695
        %s2697 = sand.u32 %s132, 1
        %s2698 = scalar_lea.sflag [#allocation5], %s2697
        %s2699 = sand.u32 %s132, 1
        %s2700 = smul.addr %s2699, 64
        %s2701 = scalar_lea.vmem [#allocation4], %s2700
        %s2702 = sand.u32 %s158, 1
        %s2703 = scalar_lea.sflag [#allocation7], %s2702
        %s2704 = sand.u32 %s158, 1
        %s2705 = smul.addr %s2704, 2
        %s2706 = scalar_lea.vmem [#allocation6], %s2705
        // Predicated region
        $region37: #{tpu_custom_call.1} parent=35 // pred_check
          %p2707 = pneg %p142
        $region38: #{tpu_custom_call.1} parent=35 // pred_check_branch
          %2709 = sbr.rel (%p2707) target = $region40
        $region39: #{tpu_custom_call.1} parent=35 // pred_region
          %s2710 = smul.u32 16, %s23
          %s2712 = ssub.s32 1024, 1024
          %2713 = vsyncadd %s2698, %s2712
          %s2714 = smul.addr %s2710, 64
          %s2715 = scalar_lea.hbm %s4, %s2714
          %s2716 = sshll.u32 %s2701, 4
          %s2717 = int_to_ptr.vmem [resolvable:$true] %s2716
          %2722 = dma.vmem_to_hbm [thread:$0]  %s2717, 1024, %s2715, %s2698, 64, 64, 4
        $region40: #{tpu_custom_call.1} parent=35 // pred_fallthru
          _
        // Predicated region
        $region41: #{tpu_custom_call.1} parent=35 // pred_check
          %p2723 = pneg %p168
        $region42: #{tpu_custom_call.1} parent=35 // pred_check_branch
          %2725 = sbr.rel (%p2723) target = $region44
        $region43: #{tpu_custom_call.1} parent=35 // pred_region
          %s2727 = ssub.s32 32, 32
          %2728 = vsyncadd %s2703, %s2727
          %s2729 = smul.addr %s23, 32
          %s2730 = scalar_lea.hbm %s5, %s2729
          %s2732 = sshll.u32 %s2706, 4
          %s2733 = int_to_ptr.vmem [resolvable:$true] %s2732
          %2735 = dma.vmem_to_hbm [thread:$0]  %s2733, 32, %s2730, %s2703
        $region44: #{tpu_custom_call.1} parent=35 // pred_fallthru
          _
      $region36: #{tpu_custom_call.1} parent=5 // pred_fallthru
        _
      %p2736 = scmp.le.s32.totalorder 2, %s18
      // Predicated region
      $region45: #{tpu_custom_call.1} parent=5 // pred_check
        %p2737 = pneg %p2736
      $region46: #{tpu_custom_call.1} parent=5 // pred_check_branch
        %2739 = sbr.rel (%p2737) target = $region48
      $region47: #{tpu_custom_call.1} parent=5 // pred_region
        %s2740 = ssub.s32 %s18, 2
        // Predicated region
        $region49: #{tpu_custom_call.1} parent=47 // pred_check
          %p2741 = pneg %p148
        $region50: #{tpu_custom_call.1} parent=47 // pred_check_branch
          %2743 = sbr.rel (%p2741) target = $region52
        $region51: #{tpu_custom_call.1} parent=47 // pred_region
          %s2744 = sand.u32 %s133, 1
          %s2745 = scalar_lea.sflag [#allocation5], %s2744
          %s2746 = sand.u32 %s133, 1
          %s2747 = smul.addr %s2746, 64
          %s2748 = scalar_lea.vmem [#allocation4], %s2747
          %2749 = dma.done %s2745, 1024
        $region52: #{tpu_custom_call.1} parent=47 // pred_fallthru
          _
        // Predicated region
        $region53: #{tpu_custom_call.1} parent=47 // pred_check
          %p2750 = pneg %p174
        $region54: #{tpu_custom_call.1} parent=47 // pred_check_branch
          %2752 = sbr.rel (%p2750) target = $region56
        $region55: #{tpu_custom_call.1} parent=47 // pred_region
          %s2753 = sand.u32 %s159, 1
          %s2754 = scalar_lea.sflag [#allocation7], %s2753
          %s2755 = sand.u32 %s159, 1
          %s2756 = smul.addr %s2755, 2
          %s2757 = scalar_lea.vmem [#allocation6], %s2756
          %2758 = dma.done %s2754, 32
        $region56: #{tpu_custom_call.1} parent=47 // pred_fallthru
          _
      $region48: #{tpu_custom_call.1} parent=5 // pred_fallthru
        _
    $region6: #{tpu_custom_call.1} parent=1 // loop_footer
      %s22 = sadd.s32 1, %s18
    $region7: #{tpu_custom_call.1} parent=1 // loop_footer_branch
      %17 = sbr.rel target = $region3
    $region8: #{tpu_custom_call.1} parent=1 // loop_exit
      _
    %2759 = vsyncpa [#allocation5], 1
    %s2760 = scalar_lea.sflag [#allocation5], 1
    %2761 = vsyncpa %s2760, 1
    %2762 = vsyncpa [#allocation7], 1
    %s2763 = scalar_lea.sflag [#allocation7], 1
    %2764 = vsyncpa %s2763, 1

</llo_original>
